<compile_context>
chip_gen: v6e
topology: v6e:2x2x1
jax: 0.10.0
libtpu: 0.0.40
codegen_flags: <defaults>
</compile_context>

<pallas_src>
import jax
import jax.numpy as jnp
from jax import lax
from jax.experimental import pallas as pl
from jax.experimental.pallas import tpu as pltpu

# ---- small synthetic model config --------------------------------------------
B = 2           # batch
L = 8           # sequence length
D = 64          # d_model
EXPAND = 2
E = EXPAND * D  # d_inner = 128
N_STATE = 16    # d_state
K_CONV = 4      # d_conv
R_DT = 4        # dt_rank = ceil(D / 16)
EPS = 1e-5
BL = B * L      # collapsed (batch * seq) rows


def _silu(x):
    return x * (1.0 / (1.0 + jnp.exp(-x)))


def _softplus(x):
    return jnp.where(x > 20.0, x, jnp.log(1.0 + jnp.exp(x)))


# ---- fused kernel: whole (B*L, D) problem in one invocation -------------------
def residual_block_kernel(x_ref, wn_ref, win_ref, cw_ref, cb_ref, a_ref,
                          wdbc_ref, bdt_ref, dpar_ref, wout_ref,
                          o_ref, dA_scr, y_scr):
    x = x_ref[...].astype(jnp.float32)                           # (BL, D)

    # RMSNorm (ttnn.rms_norm semantics), per token row.
    var = jnp.mean(x * x, axis=-1, keepdims=True)                # (BL, 1)
    xn = x * lax.rsqrt(var + EPS) * wn_ref[...]                  # (BL, D)

    # in_proj (bf16 MXU operands, f32 accumulate) -> conv branch xi, gate z.
    xz = jnp.dot(xn.astype(jnp.bfloat16), win_ref[...],
                 preferred_element_type=jnp.float32)             # (BL, 2E)
    xi = xz[:, :E]
    z = xz[:, E:]

    # Depthwise causal conv1d (kernel K, left pad K-1, truncated) per length-L
    # segment, then SiLU.  row % L < shift means the tap would cross a sequence
    # boundary -> masked to the implicit zero padding.
    cw = cw_ref[...]                                             # (K, E)
    row_mod = lax.broadcasted_iota(jnp.int32, (BL, E), 0) % L
    acc = xi * cw[K_CONV - 1:K_CONV, :] + cb_ref[...]            # shift-0 tap, no mask
    for k in range(K_CONV - 1):
        s = K_CONV - 1 - k                                       # left shift for tap k
        shifted = pltpu.roll(xi, shift=s, axis=0)
        shifted = jnp.where(row_mod >= s, shifted, 0.0)
        acc = acc + shifted * cw[k:k + 1, :]
    u = _silu(acc)                                               # (BL, E)
    u_b = u.astype(jnp.bfloat16)

    # Fused delta / B / C projections: one MXU pass against the host-built
    # (E, E + 2N) weight  [wdl@wdt | B_proj | C_proj].
    dbc = jnp.dot(u_b, wdbc_ref[...],
                  preferred_element_type=jnp.float32)            # (BL, E+2N)
    delta = _softplus(dbc[:, :E] + bdt_ref[...])                 # (BL, E)
    bc_t = jnp.transpose(dbc[:, E:])                             # (2N, BL)
    Bm_t = bc_t[:N_STATE]                                        # (N, BL)
    Cm_t = bc_t[N_STATE:]                                        # (N, BL)

    du = delta * u                                               # (BL, E)

    # dA for all steps: per-row sublane-broadcast mul, then ONE bulk EUP exp
    # over the whole (BL, N, E) scratch (A = -exp(A_log) already on the host).
    A = a_ref[...]                                               # (N, E)
    for l in range(BL):                                          # static unroll (tiny)
        dA_scr[l] = delta[l:l + 1, :] * A                        # (N, E)
    dA_scr[...] = jnp.exp(dA_scr[...])                           # single long EUP stream

    # Selective scan: the state FMA is the only serial chain; dBu and the
    # C-weighted sublane reduce are independent VPU/XLU work the scheduler can
    # overlap with it.  State resets at every sequence boundary (i % L == 0).
    state = jnp.zeros((N_STATE, E), jnp.float32)
    for i in range(BL):                                          # static unroll (tiny)
        if i % L == 0:
            state = jnp.zeros((N_STATE, E), jnp.float32)
        dbu = Bm_t[:, i:i + 1] * du[i:i + 1, :]                  # (N, E)
        state = dA_scr[i] * state + dbu
        y_scr[pl.ds(i, 1), :] = jnp.sum(Cm_t[:, i:i + 1] * state,
                                        axis=0, keepdims=True)   # (1, E)

    y = y_scr[...]                                               # (BL, E)
    y = y + u * dpar_ref[...]                                    # skip (D parameter)
    y = y * _silu(z)                                             # gating

    out = jnp.dot(y.astype(jnp.bfloat16), wout_ref[...],
                  preferred_element_type=jnp.float32)            # (BL, D)
    o_ref[...] = (x + out).astype(o_ref.dtype)                   # residual add


def tt_residual_block(x, params):
    wn, win, cw, cb, wdl, wbt, wc, wdt, bdt, at, dpar, wout = params
    Bn, Ln, Dn = x.shape
    BLn = Bn * Ln

    # Host-side (one-time) parameter fusions:
    #   A      = -exp(A_log^T)                    (N, E)  -- removes in-kernel exp
    #   W_dbc  = [wdl@wdt | B_proj | C_proj]      (E, E+2N) -- one MXU pass
    a_neg = -jnp.exp(at)                                         # (N, E)
    wdbc = jnp.concatenate([wdl @ wdt, jnp.transpose(wbt), wc],
                           axis=1).astype(jnp.bfloat16)          # (E, E+2N)
    win_b = win.astype(jnp.bfloat16)
    wout_b = wout.astype(jnp.bfloat16)

    x2 = x.reshape(BLn, Dn)                                      # collapse batch grid

    def vspec(a):
        nd = a.ndim
        return pl.BlockSpec(a.shape, lambda i, _n=nd: (0,) * _n)

    out2 = pl.pallas_call(
        residual_block_kernel,
        out_shape=jax.ShapeDtypeStruct((BLn, Dn), x.dtype),
        grid_spec=pltpu.PrefetchScalarGridSpec(
            num_scalar_prefetch=0,
            grid=(1,),                                           # single invocation
            in_specs=[
                vspec(x2), vspec(wn), vspec(win_b), vspec(cw), vspec(cb),
                vspec(a_neg), vspec(wdbc), vspec(bdt), vspec(dpar), vspec(wout_b),
            ],
            out_specs=pl.BlockSpec((BLn, Dn), lambda i: (0, 0)),
            scratch_shapes=[
                pltpu.VMEM((BLn, N_STATE, E), jnp.float32),      # dA_all
                pltpu.VMEM((BLn, E), jnp.float32),               # y rows
            ],
        ),
        input_output_aliases={0: 0},                             # x2 buffer -> out buffer
        compiler_params=pltpu.CompilerParams(
            dimension_semantics=("arbitrary",)),
    )(x2, wn, win_b, cw, cb, a_neg, wdbc, bdt, dpar, wout_b)
    return out2.reshape(Bn, Ln, Dn)


# ---- deterministic synthetic parameters --------------------------------------
def init_params(key):
    ks = jax.random.split(key, 8)
    scale = 0.1
    wn = jnp.ones((1, D), jnp.float32) + 0.05 * jax.random.normal(ks[0], (1, D), jnp.float32)
    win = scale * jax.random.normal(ks[1], (D, 2 * E), jnp.float32)        # in_proj (D -> 2E)
    cw = scale * jax.random.normal(ks[2], (K_CONV, E), jnp.float32)        # depthwise conv taps
    cb = scale * jax.random.normal(ks[3], (1, E), jnp.float32)             # conv bias
    wxp = scale * jax.random.normal(ks[4], (E, R_DT + 2 * N_STATE), jnp.float32)  # x_proj
    wdl = wxp[:, :R_DT]                                                    # delta low-rank
    wbt = jnp.transpose(wxp[:, R_DT:R_DT + N_STATE])                       # (N, E) = B-proj^T
    wc = wxp[:, R_DT + N_STATE:]                                           # (E, N)
    wdt = scale * jax.random.normal(ks[5], (R_DT, E), jnp.float32)         # dt_proj weight
    bdt = scale * jax.random.normal(ks[6], (1, E), jnp.float32)            # dt_proj bias
    a = jnp.tile(jnp.arange(1, N_STATE + 1, dtype=jnp.float32)[None, :], (E, 1))  # (E, N)
    at = jnp.transpose(jnp.log(a))                                         # A_log^T -> (N, E)
    dpar = jnp.ones((1, E), jnp.float32)                                   # D parameter
    wout = scale * jax.random.normal(ks[7], (E, D), jnp.float32)           # out_proj
    return (wn, win, cw, cb, wdl, wbt, wc, wdt, bdt, at, dpar, wout)


# ---- pure-JAX f32 reference for validation ------------------------------------
def reference(x, params):
    wn, win, cw, cb, wdl, wbt, wc, wdt, bdt, at, dpar, wout = params

    def one(xb):
        var = jnp.mean(xb * xb, axis=-1, keepdims=True)
        xn = xb * lax.rsqrt(var + EPS) * wn
        xz = xn @ win
        xi, z = xz[:, :E], xz[:, E:]
        acc = jnp.zeros((L, E), jnp.float32)
        for k in range(K_CONV):
            s = K_CONV - 1 - k
            shifted = jnp.pad(xi, ((s, 0), (0, 0)))[:L] if s else xi
            acc = acc + shifted * cw[k:k + 1]
        acc = acc + cb
        u = acc * jax.nn.sigmoid(acc)
        dlt = jax.nn.softplus(u @ wdl @ wdt + bdt)          # (L, E)
        Bm = u @ jnp.transpose(wbt)                         # (L, N)
        Cm = u @ wc                                         # (L, N)
        A = -jnp.exp(jnp.transpose(at))                     # (E, N)
        state = jnp.zeros((E, N_STATE), jnp.float32)
        ys = []
        for i in range(L):
            dA = jnp.exp(dlt[i][:, None] * A)
            dBu = (dlt[i] * u[i])[:, None] * Bm[i][None, :]
            state = dA * state + dBu
            ys.append(jnp.sum(state * Cm[i][None, :], axis=-1))
        y = jnp.stack(ys, axis=0)
        y = y + u * dpar
        y = y * (z * jax.nn.sigmoid(z))
        return xb + y @ wout

    return jax.vmap(one)(x)


if __name__ == "__main__":
    key = jax.random.PRNGKey(0)
    kx, kp = jax.random.split(key)
    x = jax.random.normal(kx, (B, L, D), jnp.float32)
    params = init_params(kp)

    # Reference first (kernel output may alias its reshaped input buffer).
    ref = reference(x, params)

    out = tt_residual_block(x, params)
    out = jax.block_until_ready(out)

    max_err = float(jnp.max(jnp.abs(out - ref)))
    assert out.shape == (B, L, D)
    # bf16 MXU operands (f32 accumulate) vs. the f32 reference: observed error
    # is O(1e-3); 2e-2 keeps a safety margin while still catching real bugs.
    assert max_err < 2e-2, f"max abs err {max_err}"
    print("KERNEL_OK")
</pallas_src>

<mosaic_0001>
module attributes {stable_mosaic.version = 11 : i64} {
  func.func @residual_block_kernel(%arg0: i32, %arg1: memref<16x64xf32, #tpu.memory_space<vmem>>, %arg2: memref<1x64xf32, #tpu.memory_space<vmem>>, %arg3: memref<64x256xbf16, #tpu.memory_space<vmem>>, %arg4: memref<4x128xf32, #tpu.memory_space<vmem>>, %arg5: memref<1x128xf32, #tpu.memory_space<vmem>>, %arg6: memref<16x128xf32, #tpu.memory_space<vmem>>, %arg7: memref<128x160xbf16, #tpu.memory_space<vmem>>, %arg8: memref<1x128xf32, #tpu.memory_space<vmem>>, %arg9: memref<1x128xf32, #tpu.memory_space<vmem>>, %arg10: memref<128x64xbf16, #tpu.memory_space<vmem>>, %arg11: memref<16x64xf32, #tpu.memory_space<vmem>>, %arg12: memref<16x16x128xf32, #tpu.memory_space<vmem>>, %arg13: memref<16x128xf32, #tpu.memory_space<vmem>>) attributes {dimension_semantics = [#tpu.dimension_semantics<arbitrary>], iteration_bounds = array<i64: 1>, scalar_prefetch = 0 : i64, scratch_operands = 2 : i64, tpu.core_type = #tpu.core_type<tc>, window_params = [{pipeline_mode = #tpu.pipeline_mode<synchronous>, transform_indices = @transform_0, window_bounds = array<i64: 16, 64>}, {pipeline_mode = #tpu.pipeline_mode<synchronous>, transform_indices = @transform_1, window_bounds = array<i64: 1, 64>}, {pipeline_mode = #tpu.pipeline_mode<synchronous>, transform_indices = @transform_2, window_bounds = array<i64: 64, 256>}, {pipeline_mode = #tpu.pipeline_mode<synchronous>, transform_indices = @transform_3, window_bounds = array<i64: 4, 128>}, {pipeline_mode = #tpu.pipeline_mode<synchronous>, transform_indices = @transform_4, window_bounds = array<i64: 1, 128>}, {pipeline_mode = #tpu.pipeline_mode<synchronous>, transform_indices = @transform_5, window_bounds = array<i64: 16, 128>}, {pipeline_mode = #tpu.pipeline_mode<synchronous>, transform_indices = @transform_6, window_bounds = array<i64: 128, 160>}, {pipeline_mode = #tpu.pipeline_mode<synchronous>, transform_indices = @transform_7, window_bounds = array<i64: 1, 128>}, {pipeline_mode = #tpu.pipeline_mode<synchronous>, transform_indices = @transform_8, window_bounds = array<i64: 1, 128>}, {pipeline_mode = #tpu.pipeline_mode<synchronous>, transform_indices = @transform_9, window_bounds = array<i64: 128, 64>}, {pipeline_mode = #tpu.pipeline_mode<synchronous>, transform_indices = @transform_10, window_bounds = array<i64: 16, 64>}]} {
    %c0 = arith.constant 0 : index
    %c0_0 = arith.constant 0 : index
    %0 = vector.load %arg1[%c0, %c0_0] : memref<16x64xf32, #tpu.memory_space<vmem>>, vector<16x64xf32>
    %1 = arith.mulf %0, %0 : vector<16x64xf32>
    %cst = arith.constant dense<0.000000e+00> : vector<16xf32>
    %2 = vector.multi_reduction <add>, %1, %cst [1] : vector<16x64xf32> to vector<16xf32>
    %3 = vector.shape_cast %2 : vector<16xf32> to vector<16x1xf32>
    %cst_1 = arith.constant 6.400000e+01 : f32
    %4 = vector.broadcast %cst_1 : f32 to vector<16x1xf32>
    %5 = arith.divf %3, %4 : vector<16x1xf32>
    %cst_2 = arith.constant 9.99999974E-6 : f32
    %6 = vector.broadcast %cst_2 : f32 to vector<16x1xf32>
    %7 = arith.addf %5, %6 : vector<16x1xf32>
    %8 = math.rsqrt %7 : vector<16x1xf32>
    %9 = vector.broadcast %8 : vector<16x1xf32> to vector<16x64xf32>
    %10 = arith.mulf %0, %9 : vector<16x64xf32>
    %c0_3 = arith.constant 0 : index
    %c0_4 = arith.constant 0 : index
    %11 = vector.load %arg2[%c0_3, %c0_4] : memref<1x64xf32, #tpu.memory_space<vmem>>, vector<1x64xf32>
    %12 = vector.broadcast %11 : vector<1x64xf32> to vector<16x64xf32>
    %13 = arith.mulf %10, %12 : vector<16x64xf32>
    %14 = arith.truncf %13 : vector<16x64xf32> to vector<16x64xbf16>
    %c0_5 = arith.constant 0 : index
    %c0_6 = arith.constant 0 : index
    %15 = vector.load %arg3[%c0_5, %c0_6] : memref<64x256xbf16, #tpu.memory_space<vmem>>, vector<64x256xbf16>
    %cst_7 = arith.constant dense<0.000000e+00> : vector<16x256xf32>
    %16 = tpu.matmul %14, %15, %cst_7 {dimension_numbers = #tpu.dot_dimension_numbers<[1], [0], [0], [1], [0, 0, 1, 1], [], []>} : vector<16x64xbf16>, vector<64x256xbf16>, vector<16x256xf32> -> vector<16x256xf32>
    %17 = vector.extract_strided_slice %16 {offsets = [0, 0], sizes = [16, 128], strides = [1, 1]} : vector<16x256xf32> to vector<16x128xf32>
    %18 = vector.extract_strided_slice %16 {offsets = [0, 128], sizes = [16, 128], strides = [1, 1]} : vector<16x256xf32> to vector<16x128xf32>
    %c0_8 = arith.constant 0 : index
    %c0_9 = arith.constant 0 : index
    %19 = vector.load %arg4[%c0_8, %c0_9] : memref<4x128xf32, #tpu.memory_space<vmem>>, vector<4x128xf32>
    %20 = tpu.iota {dimensions = array<i32: 0>} : vector<16x128xi32>
    %c8_i32 = arith.constant 8 : i32
    %c0_i32 = arith.constant 0 : i32
    %21 = arith.cmpi eq, %c8_i32, %c0_i32 : i32
    %c1_i32 = arith.constant 1 : i32
    %22 = arith.select %21, %c1_i32, %c8_i32 : i32
    %23 = vector.broadcast %22 : i32 to vector<16x128xi32>
    %24 = arith.remsi %20, %23 : vector<16x128xi32>
    %c0_i32_10 = arith.constant 0 : i32
    %25 = vector.broadcast %c0_i32_10 : i32 to vector<16x128xi32>
    %26 = arith.cmpi ne, %24, %25 : vector<16x128xi32>
    %c0_i32_11 = arith.constant 0 : i32
    %27 = vector.broadcast %c0_i32_11 : i32 to vector<16x128xi32>
    %28 = arith.cmpi slt, %24, %27 : vector<16x128xi32>
    %c0_i32_12 = arith.constant 0 : i32
    %29 = arith.cmpi slt, %22, %c0_i32_12 : i32
    %30 = vector.broadcast %29 : i1 to vector<16x128xi1>
    %31 = vector.broadcast %30 : vector<16x128xi1> to vector<16x128xi1>
    %32 = arith.xori %28, %31 : vector<16x128xi1>
    %33 = arith.andi %32, %26 : vector<16x128xi1>
    %34 = vector.broadcast %22 : i32 to vector<16x128xi32>
    %35 = arith.addi %24, %34 : vector<16x128xi32>
    %36 = arith.select %33, %35, %24 : vector<16x128xi1>, vector<16x128xi32>
    %37 = vector.extract_strided_slice %19 {offsets = [3, 0], sizes = [1, 128], strides = [1, 1]} : vector<4x128xf32> to vector<1x128xf32>
    %38 = vector.broadcast %37 : vector<1x128xf32> to vector<16x128xf32>
    %39 = arith.mulf %17, %38 : vector<16x128xf32>
    %c0_13 = arith.constant 0 : index
    %c0_14 = arith.constant 0 : index
    %40 = vector.load %arg5[%c0_13, %c0_14] : memref<1x128xf32, #tpu.memory_space<vmem>>, vector<1x128xf32>
    %41 = vector.broadcast %40 : vector<1x128xf32> to vector<16x128xf32>
    %42 = arith.addf %39, %41 : vector<16x128xf32>
    %c3_i32 = arith.constant 3 : i32
    %43 = tpu.dynamic_rotate %17 by %c3_i32 dim 0 : vector<16x128xf32>, i32 -> vector<16x128xf32>
    %c3_i32_15 = arith.constant 3 : i32
    %44 = vector.broadcast %c3_i32_15 : i32 to vector<16x128xi32>
    %45 = arith.cmpi sge, %36, %44 : vector<16x128xi32>
    %cst_16 = arith.constant 0.000000e+00 : f32
    %46 = vector.broadcast %cst_16 : f32 to vector<16x128xf32>
    %47 = arith.select %45, %43, %46 : vector<16x128xi1>, vector<16x128xf32>
    %48 = vector.extract_strided_slice %19 {offsets = [0, 0], sizes = [1, 128], strides = [1, 1]} : vector<4x128xf32> to vector<1x128xf32>
    %49 = vector.broadcast %48 : vector<1x128xf32> to vector<16x128xf32>
    %50 = arith.mulf %47, %49 : vector<16x128xf32>
    %51 = arith.addf %42, %50 : vector<16x128xf32>
    %c2_i32 = arith.constant 2 : i32
    %52 = tpu.dynamic_rotate %17 by %c2_i32 dim 0 : vector<16x128xf32>, i32 -> vector<16x128xf32>
    %c2_i32_17 = arith.constant 2 : i32
    %53 = vector.broadcast %c2_i32_17 : i32 to vector<16x128xi32>
    %54 = arith.cmpi sge, %36, %53 : vector<16x128xi32>
    %cst_18 = arith.constant 0.000000e+00 : f32
    %55 = vector.broadcast %cst_18 : f32 to vector<16x128xf32>
    %56 = arith.select %54, %52, %55 : vector<16x128xi1>, vector<16x128xf32>
    %57 = vector.extract_strided_slice %19 {offsets = [1, 0], sizes = [1, 128], strides = [1, 1]} : vector<4x128xf32> to vector<1x128xf32>
    %58 = vector.broadcast %57 : vector<1x128xf32> to vector<16x128xf32>
    %59 = arith.mulf %56, %58 : vector<16x128xf32>
    %60 = arith.addf %51, %59 : vector<16x128xf32>
    %c1_i32_19 = arith.constant 1 : i32
    %61 = tpu.dynamic_rotate %17 by %c1_i32_19 dim 0 : vector<16x128xf32>, i32 -> vector<16x128xf32>
    %c1_i32_20 = arith.constant 1 : i32
    %62 = vector.broadcast %c1_i32_20 : i32 to vector<16x128xi32>
    %63 = arith.cmpi sge, %36, %62 : vector<16x128xi32>
    %cst_21 = arith.constant 0.000000e+00 : f32
    %64 = vector.broadcast %cst_21 : f32 to vector<16x128xf32>
    %65 = arith.select %63, %61, %64 : vector<16x128xi1>, vector<16x128xf32>
    %66 = vector.extract_strided_slice %19 {offsets = [2, 0], sizes = [1, 128], strides = [1, 1]} : vector<4x128xf32> to vector<1x128xf32>
    %67 = vector.broadcast %66 : vector<1x128xf32> to vector<16x128xf32>
    %68 = arith.mulf %65, %67 : vector<16x128xf32>
    %69 = arith.addf %60, %68 : vector<16x128xf32>
    %cst_22 = arith.constant 0.000000e+00 : f32
    %70 = vector.broadcast %cst_22 : f32 to vector<16x128xf32>
    %71 = arith.subf %70, %69 : vector<16x128xf32>
    %72 = math.exp %71 : vector<16x128xf32>
    %cst_23 = arith.constant 1.000000e+00 : f32
    %73 = vector.broadcast %cst_23 : f32 to vector<16x128xf32>
    %74 = arith.addf %73, %72 : vector<16x128xf32>
    %cst_24 = arith.constant 1.000000e+00 : f32
    %75 = vector.broadcast %cst_24 : f32 to vector<16x128xf32>
    %76 = arith.divf %75, %74 : vector<16x128xf32>
    %77 = arith.mulf %69, %76 : vector<16x128xf32>
    %78 = arith.truncf %77 : vector<16x128xf32> to vector<16x128xbf16>
    %c0_25 = arith.constant 0 : index
    %c0_26 = arith.constant 0 : index
    %79 = vector.load %arg7[%c0_25, %c0_26] : memref<128x160xbf16, #tpu.memory_space<vmem>>, vector<128x160xbf16>
    %cst_27 = arith.constant dense<0.000000e+00> : vector<16x160xf32>
    %80 = tpu.matmul %78, %79, %cst_27 {dimension_numbers = #tpu.dot_dimension_numbers<[1], [0], [0], [1], [0, 0, 1, 1], [], []>} : vector<16x128xbf16>, vector<128x160xbf16>, vector<16x160xf32> -> vector<16x160xf32>
    %81 = vector.extract_strided_slice %80 {offsets = [0, 0], sizes = [16, 128], strides = [1, 1]} : vector<16x160xf32> to vector<16x128xf32>
    %c0_28 = arith.constant 0 : index
    %c0_29 = arith.constant 0 : index
    %82 = vector.load %arg8[%c0_28, %c0_29] : memref<1x128xf32, #tpu.memory_space<vmem>>, vector<1x128xf32>
    %83 = vector.broadcast %82 : vector<1x128xf32> to vector<16x128xf32>
    %84 = arith.addf %81, %83 : vector<16x128xf32>
    %cst_30 = arith.constant 2.000000e+01 : f32
    %85 = vector.broadcast %cst_30 : f32 to vector<16x128xf32>
    %86 = arith.cmpf ogt, %84, %85 : vector<16x128xf32>
    %87 = math.exp %84 : vector<16x128xf32>
    %cst_31 = arith.constant 1.000000e+00 : f32
    %88 = vector.broadcast %cst_31 : f32 to vector<16x128xf32>
    %89 = arith.addf %88, %87 : vector<16x128xf32>
    %90 = math.log %89 : vector<16x128xf32>
    %91 = arith.select %86, %84, %90 : vector<16x128xi1>, vector<16x128xf32>
    %92 = vector.extract_strided_slice %80 {offsets = [0, 128], sizes = [16, 32], strides = [1, 1]} : vector<16x160xf32> to vector<16x32xf32>
    %93 = tpu.transpose %92, [1, 0] : vector<16x32xf32> -> vector<32x16xf32>
    %94 = vector.extract_strided_slice %93 {offsets = [0, 0], sizes = [16, 16], strides = [1, 1]} : vector<32x16xf32> to vector<16x16xf32>
    %95 = vector.extract_strided_slice %93 {offsets = [16, 0], sizes = [16, 16], strides = [1, 1]} : vector<32x16xf32> to vector<16x16xf32>
    %96 = arith.mulf %91, %77 : vector<16x128xf32>
    %c0_32 = arith.constant 0 : index
    %c0_33 = arith.constant 0 : index
    %97 = vector.load %arg6[%c0_32, %c0_33] : memref<16x128xf32, #tpu.memory_space<vmem>>, vector<16x128xf32>
    %98 = vector.extract_strided_slice %91 {offsets = [0, 0], sizes = [1, 128], strides = [1, 1]} : vector<16x128xf32> to vector<1x128xf32>
    %99 = vector.broadcast %98 : vector<1x128xf32> to vector<16x128xf32>
    %100 = arith.mulf %99, %97 : vector<16x128xf32>
    %c0_34 = arith.constant 0 : index
    %c0_35 = arith.constant 0 : index
    %c0_36 = arith.constant 0 : index
    %101 = vector.load %arg12[%c0_34, %c0_35, %c0_36] : memref<16x16x128xf32, #tpu.memory_space<vmem>>, vector<1x16x128xf32>
    %102 = vector.shape_cast %101 : vector<1x16x128xf32> to vector<16x128xf32>
    %103 = vector.shape_cast %100 : vector<16x128xf32> to vector<1x16x128xf32>
    tpu.vector_store %arg12[%c0_34, %c0_35, %c0_36], %103 {strides = array<i32>} : memref<16x16x128xf32, #tpu.memory_space<vmem>>, vector<1x16x128xf32>,
    %104 = vector.extract_strided_slice %91 {offsets = [1, 0], sizes = [1, 128], strides = [1, 1]} : vector<16x128xf32> to vector<1x128xf32>
    %105 = vector.broadcast %104 : vector<1x128xf32> to vector<16x128xf32>
    %106 = arith.mulf %105, %97 : vector<16x128xf32>
    %c1 = arith.constant 1 : index
    %c0_37 = arith.constant 0 : index
    %c0_38 = arith.constant 0 : index
    %107 = vector.load %arg12[%c1, %c0_37, %c0_38] : memref<16x16x128xf32, #tpu.memory_space<vmem>>, vector<1x16x128xf32>
    %108 = vector.shape_cast %107 : vector<1x16x128xf32> to vector<16x128xf32>
    %109 = vector.shape_cast %106 : vector<16x128xf32> to vector<1x16x128xf32>
    tpu.vector_store %arg12[%c1, %c0_37, %c0_38], %109 {strides = array<i32>} : memref<16x16x128xf32, #tpu.memory_space<vmem>>, vector<1x16x128xf32>,
    %110 = vector.extract_strided_slice %91 {offsets = [2, 0], sizes = [1, 128], strides = [1, 1]} : vector<16x128xf32> to vector<1x128xf32>
    %111 = vector.broadcast %110 : vector<1x128xf32> to vector<16x128xf32>
    %112 = arith.mulf %111, %97 : vector<16x128xf32>
    %c2 = arith.constant 2 : index
    %c0_39 = arith.constant 0 : index
    %c0_40 = arith.constant 0 : index
    %113 = vector.load %arg12[%c2, %c0_39, %c0_40] : memref<16x16x128xf32, #tpu.memory_space<vmem>>, vector<1x16x128xf32>
    %114 = vector.shape_cast %113 : vector<1x16x128xf32> to vector<16x128xf32>
    %115 = vector.shape_cast %112 : vector<16x128xf32> to vector<1x16x128xf32>
    tpu.vector_store %arg12[%c2, %c0_39, %c0_40], %115 {strides = array<i32>} : memref<16x16x128xf32, #tpu.memory_space<vmem>>, vector<1x16x128xf32>,
    %116 = vector.extract_strided_slice %91 {offsets = [3, 0], sizes = [1, 128], strides = [1, 1]} : vector<16x128xf32> to vector<1x128xf32>
    %117 = vector.broadcast %116 : vector<1x128xf32> to vector<16x128xf32>
    %118 = arith.mulf %117, %97 : vector<16x128xf32>
    %c3 = arith.constant 3 : index
    %c0_41 = arith.constant 0 : index
    %c0_42 = arith.constant 0 : index
    %119 = vector.load %arg12[%c3, %c0_41, %c0_42] : memref<16x16x128xf32, #tpu.memory_space<vmem>>, vector<1x16x128xf32>
    %120 = vector.shape_cast %119 : vector<1x16x128xf32> to vector<16x128xf32>
    %121 = vector.shape_cast %118 : vector<16x128xf32> to vector<1x16x128xf32>
    tpu.vector_store %arg12[%c3, %c0_41, %c0_42], %121 {strides = array<i32>} : memref<16x16x128xf32, #tpu.memory_space<vmem>>, vector<1x16x128xf32>,
    %122 = vector.extract_strided_slice %91 {offsets = [4, 0], sizes = [1, 128], strides = [1, 1]} : vector<16x128xf32> to vector<1x128xf32>
    %123 = vector.broadcast %122 : vector<1x128xf32> to vector<16x128xf32>
    %124 = arith.mulf %123, %97 : vector<16x128xf32>
    %c4 = arith.constant 4 : index
    %c0_43 = arith.constant 0 : index
    %c0_44 = arith.constant 0 : index
    %125 = vector.load %arg12[%c4, %c0_43, %c0_44] : memref<16x16x128xf32, #tpu.memory_space<vmem>>, vector<1x16x128xf32>
    %126 = vector.shape_cast %125 : vector<1x16x128xf32> to vector<16x128xf32>
    %127 = vector.shape_cast %124 : vector<16x128xf32> to vector<1x16x128xf32>
    tpu.vector_store %arg12[%c4, %c0_43, %c0_44], %127 {strides = array<i32>} : memref<16x16x128xf32, #tpu.memory_space<vmem>>, vector<1x16x128xf32>,
    %128 = vector.extract_strided_slice %91 {offsets = [5, 0], sizes = [1, 128], strides = [1, 1]} : vector<16x128xf32> to vector<1x128xf32>
    %129 = vector.broadcast %128 : vector<1x128xf32> to vector<16x128xf32>
    %130 = arith.mulf %129, %97 : vector<16x128xf32>
    %c5 = arith.constant 5 : index
    %c0_45 = arith.constant 0 : index
    %c0_46 = arith.constant 0 : index
    %131 = vector.load %arg12[%c5, %c0_45, %c0_46] : memref<16x16x128xf32, #tpu.memory_space<vmem>>, vector<1x16x128xf32>
    %132 = vector.shape_cast %131 : vector<1x16x128xf32> to vector<16x128xf32>
    %133 = vector.shape_cast %130 : vector<16x128xf32> to vector<1x16x128xf32>
    tpu.vector_store %arg12[%c5, %c0_45, %c0_46], %133 {strides = array<i32>} : memref<16x16x128xf32, #tpu.memory_space<vmem>>, vector<1x16x128xf32>,
    %134 = vector.extract_strided_slice %91 {offsets = [6, 0], sizes = [1, 128], strides = [1, 1]} : vector<16x128xf32> to vector<1x128xf32>
    %135 = vector.broadcast %134 : vector<1x128xf32> to vector<16x128xf32>
    %136 = arith.mulf %135, %97 : vector<16x128xf32>
    %c6 = arith.constant 6 : index
    %c0_47 = arith.constant 0 : index
    %c0_48 = arith.constant 0 : index
    %137 = vector.load %arg12[%c6, %c0_47, %c0_48] : memref<16x16x128xf32, #tpu.memory_space<vmem>>, vector<1x16x128xf32>
    %138 = vector.shape_cast %137 : vector<1x16x128xf32> to vector<16x128xf32>
    %139 = vector.shape_cast %136 : vector<16x128xf32> to vector<1x16x128xf32>
    tpu.vector_store %arg12[%c6, %c0_47, %c0_48], %139 {strides = array<i32>} : memref<16x16x128xf32, #tpu.memory_space<vmem>>, vector<1x16x128xf32>,
    %140 = vector.extract_strided_slice %91 {offsets = [7, 0], sizes = [1, 128], strides = [1, 1]} : vector<16x128xf32> to vector<1x128xf32>
    %141 = vector.broadcast %140 : vector<1x128xf32> to vector<16x128xf32>
    %142 = arith.mulf %141, %97 : vector<16x128xf32>
    %c7 = arith.constant 7 : index
    %c0_49 = arith.constant 0 : index
    %c0_50 = arith.constant 0 : index
    %143 = vector.load %arg12[%c7, %c0_49, %c0_50] : memref<16x16x128xf32, #tpu.memory_space<vmem>>, vector<1x16x128xf32>
    %144 = vector.shape_cast %143 : vector<1x16x128xf32> to vector<16x128xf32>
    %145 = vector.shape_cast %142 : vector<16x128xf32> to vector<1x16x128xf32>
    tpu.vector_store %arg12[%c7, %c0_49, %c0_50], %145 {strides = array<i32>} : memref<16x16x128xf32, #tpu.memory_space<vmem>>, vector<1x16x128xf32>,
    %146 = vector.extract_strided_slice %91 {offsets = [8, 0], sizes = [1, 128], strides = [1, 1]} : vector<16x128xf32> to vector<1x128xf32>
    %147 = vector.broadcast %146 : vector<1x128xf32> to vector<16x128xf32>
    %148 = arith.mulf %147, %97 : vector<16x128xf32>
    %c8 = arith.constant 8 : index
    %c0_51 = arith.constant 0 : index
    %c0_52 = arith.constant 0 : index
    %149 = vector.load %arg12[%c8, %c0_51, %c0_52] : memref<16x16x128xf32, #tpu.memory_space<vmem>>, vector<1x16x128xf32>
    %150 = vector.shape_cast %149 : vector<1x16x128xf32> to vector<16x128xf32>
    %151 = vector.shape_cast %148 : vector<16x128xf32> to vector<1x16x128xf32>
    tpu.vector_store %arg12[%c8, %c0_51, %c0_52], %151 {strides = array<i32>} : memref<16x16x128xf32, #tpu.memory_space<vmem>>, vector<1x16x128xf32>,
    %152 = vector.extract_strided_slice %91 {offsets = [9, 0], sizes = [1, 128], strides = [1, 1]} : vector<16x128xf32> to vector<1x128xf32>
    %153 = vector.broadcast %152 : vector<1x128xf32> to vector<16x128xf32>
    %154 = arith.mulf %153, %97 : vector<16x128xf32>
    %c9 = arith.constant 9 : index
    %c0_53 = arith.constant 0 : index
    %c0_54 = arith.constant 0 : index
    %155 = vector.load %arg12[%c9, %c0_53, %c0_54] : memref<16x16x128xf32, #tpu.memory_space<vmem>>, vector<1x16x128xf32>
    %156 = vector.shape_cast %155 : vector<1x16x128xf32> to vector<16x128xf32>
    %157 = vector.shape_cast %154 : vector<16x128xf32> to vector<1x16x128xf32>
    tpu.vector_store %arg12[%c9, %c0_53, %c0_54], %157 {strides = array<i32>} : memref<16x16x128xf32, #tpu.memory_space<vmem>>, vector<1x16x128xf32>,
    %158 = vector.extract_strided_slice %91 {offsets = [10, 0], sizes = [1, 128], strides = [1, 1]} : vector<16x128xf32> to vector<1x128xf32>
    %159 = vector.broadcast %158 : vector<1x128xf32> to vector<16x128xf32>
    %160 = arith.mulf %159, %97 : vector<16x128xf32>
    %c10 = arith.constant 10 : index
    %c0_55 = arith.constant 0 : index
    %c0_56 = arith.constant 0 : index
    %161 = vector.load %arg12[%c10, %c0_55, %c0_56] : memref<16x16x128xf32, #tpu.memory_space<vmem>>, vector<1x16x128xf32>
    %162 = vector.shape_cast %161 : vector<1x16x128xf32> to vector<16x128xf32>
    %163 = vector.shape_cast %160 : vector<16x128xf32> to vector<1x16x128xf32>
    tpu.vector_store %arg12[%c10, %c0_55, %c0_56], %163 {strides = array<i32>} : memref<16x16x128xf32, #tpu.memory_space<vmem>>, vector<1x16x128xf32>,
    %164 = vector.extract_strided_slice %91 {offsets = [11, 0], sizes = [1, 128], strides = [1, 1]} : vector<16x128xf32> to vector<1x128xf32>
    %165 = vector.broadcast %164 : vector<1x128xf32> to vector<16x128xf32>
    %166 = arith.mulf %165, %97 : vector<16x128xf32>
    %c11 = arith.constant 11 : index
    %c0_57 = arith.constant 0 : index
    %c0_58 = arith.constant 0 : index
    %167 = vector.load %arg12[%c11, %c0_57, %c0_58] : memref<16x16x128xf32, #tpu.memory_space<vmem>>, vector<1x16x128xf32>
    %168 = vector.shape_cast %167 : vector<1x16x128xf32> to vector<16x128xf32>
    %169 = vector.shape_cast %166 : vector<16x128xf32> to vector<1x16x128xf32>
    tpu.vector_store %arg12[%c11, %c0_57, %c0_58], %169 {strides = array<i32>} : memref<16x16x128xf32, #tpu.memory_space<vmem>>, vector<1x16x128xf32>,
    %170 = vector.extract_strided_slice %91 {offsets = [12, 0], sizes = [1, 128], strides = [1, 1]} : vector<16x128xf32> to vector<1x128xf32>
    %171 = vector.broadcast %170 : vector<1x128xf32> to vector<16x128xf32>
    %172 = arith.mulf %171, %97 : vector<16x128xf32>
    %c12 = arith.constant 12 : index
    %c0_59 = arith.constant 0 : index
    %c0_60 = arith.constant 0 : index
    %173 = vector.load %arg12[%c12, %c0_59, %c0_60] : memref<16x16x128xf32, #tpu.memory_space<vmem>>, vector<1x16x128xf32>
    %174 = vector.shape_cast %173 : vector<1x16x128xf32> to vector<16x128xf32>
    %175 = vector.shape_cast %172 : vector<16x128xf32> to vector<1x16x128xf32>
    tpu.vector_store %arg12[%c12, %c0_59, %c0_60], %175 {strides = array<i32>} : memref<16x16x128xf32, #tpu.memory_space<vmem>>, vector<1x16x128xf32>,
    %176 = vector.extract_strided_slice %91 {offsets = [13, 0], sizes = [1, 128], strides = [1, 1]} : vector<16x128xf32> to vector<1x128xf32>
    %177 = vector.broadcast %176 : vector<1x128xf32> to vector<16x128xf32>
    %178 = arith.mulf %177, %97 : vector<16x128xf32>
    %c13 = arith.constant 13 : index
    %c0_61 = arith.constant 0 : index
    %c0_62 = arith.constant 0 : index
    %179 = vector.load %arg12[%c13, %c0_61, %c0_62] : memref<16x16x128xf32, #tpu.memory_space<vmem>>, vector<1x16x128xf32>
    %180 = vector.shape_cast %179 : vector<1x16x128xf32> to vector<16x128xf32>
    %181 = vector.shape_cast %178 : vector<16x128xf32> to vector<1x16x128xf32>
    tpu.vector_store %arg12[%c13, %c0_61, %c0_62], %181 {strides = array<i32>} : memref<16x16x128xf32, #tpu.memory_space<vmem>>, vector<1x16x128xf32>,
    %182 = vector.extract_strided_slice %91 {offsets = [14, 0], sizes = [1, 128], strides = [1, 1]} : vector<16x128xf32> to vector<1x128xf32>
    %183 = vector.broadcast %182 : vector<1x128xf32> to vector<16x128xf32>
    %184 = arith.mulf %183, %97 : vector<16x128xf32>
    %c14 = arith.constant 14 : index
    %c0_63 = arith.constant 0 : index
    %c0_64 = arith.constant 0 : index
    %185 = vector.load %arg12[%c14, %c0_63, %c0_64] : memref<16x16x128xf32, #tpu.memory_space<vmem>>, vector<1x16x128xf32>
    %186 = vector.shape_cast %185 : vector<1x16x128xf32> to vector<16x128xf32>
    %187 = vector.shape_cast %184 : vector<16x128xf32> to vector<1x16x128xf32>
    tpu.vector_store %arg12[%c14, %c0_63, %c0_64], %187 {strides = array<i32>} : memref<16x16x128xf32, #tpu.memory_space<vmem>>, vector<1x16x128xf32>,
    %188 = vector.extract_strided_slice %91 {offsets = [15, 0], sizes = [1, 128], strides = [1, 1]} : vector<16x128xf32> to vector<1x128xf32>
    %189 = vector.broadcast %188 : vector<1x128xf32> to vector<16x128xf32>
    %190 = arith.mulf %189, %97 : vector<16x128xf32>
    %c15 = arith.constant 15 : index
    %c0_65 = arith.constant 0 : index
    %c0_66 = arith.constant 0 : index
    %191 = vector.load %arg12[%c15, %c0_65, %c0_66] : memref<16x16x128xf32, #tpu.memory_space<vmem>>, vector<1x16x128xf32>
    %192 = vector.shape_cast %191 : vector<1x16x128xf32> to vector<16x128xf32>
    %193 = vector.shape_cast %190 : vector<16x128xf32> to vector<1x16x128xf32>
    tpu.vector_store %arg12[%c15, %c0_65, %c0_66], %193 {strides = array<i32>} : memref<16x16x128xf32, #tpu.memory_space<vmem>>, vector<1x16x128xf32>,
    %c0_67 = arith.constant 0 : index
    %c0_68 = arith.constant 0 : index
    %c0_69 = arith.constant 0 : index
    %194 = vector.load %arg12[%c0_67, %c0_68, %c0_69] : memref<16x16x128xf32, #tpu.memory_space<vmem>>, vector<16x16x128xf32>
    %195 = math.exp %194 : vector<16x16x128xf32>
    %c0_70 = arith.constant 0 : index
    %c0_71 = arith.constant 0 : index
    %c0_72 = arith.constant 0 : index
    %196 = vector.load %arg12[%c0_70, %c0_71, %c0_72] : memref<16x16x128xf32, #tpu.memory_space<vmem>>, vector<16x16x128xf32>
    tpu.vector_store %arg12[%c0_70, %c0_71, %c0_72], %195 {strides = array<i32>} : memref<16x16x128xf32, #tpu.memory_space<vmem>>, vector<16x16x128xf32>,
    %cst_73 = arith.constant 0.000000e+00 : f32
    %197 = vector.broadcast %cst_73 : f32 to vector<16x128xf32>
    %198 = vector.extract_strided_slice %94 {offsets = [0, 0], sizes = [16, 1], strides = [1, 1]} : vector<16x16xf32> to vector<16x1xf32>
    %199 = vector.extract_strided_slice %96 {offsets = [0, 0], sizes = [1, 128], strides = [1, 1]} : vector<16x128xf32> to vector<1x128xf32>
    %200 = vector.broadcast %198 : vector<16x1xf32> to vector<16x128xf32>
    %201 = vector.broadcast %199 : vector<1x128xf32> to vector<16x128xf32>
    %202 = arith.mulf %200, %201 : vector<16x128xf32>
    %c0_74 = arith.constant 0 : index
    %c0_75 = arith.constant 0 : index
    %c0_76 = arith.constant 0 : index
    %203 = vector.load %arg12[%c0_74, %c0_75, %c0_76] : memref<16x16x128xf32, #tpu.memory_space<vmem>>, vector<1x16x128xf32>
    %204 = vector.shape_cast %203 : vector<1x16x128xf32> to vector<16x128xf32>
    %205 = arith.mulf %204, %197 : vector<16x128xf32>
    %206 = arith.addf %205, %202 : vector<16x128xf32>
    %207 = vector.extract_strided_slice %95 {offsets = [0, 0], sizes = [16, 1], strides = [1, 1]} : vector<16x16xf32> to vector<16x1xf32>
    %208 = vector.broadcast %207 : vector<16x1xf32> to vector<16x128xf32>
    %209 = arith.mulf %208, %206 : vector<16x128xf32>
    %cst_77 = arith.constant dense<0.000000e+00> : vector<128xf32>
    %210 = vector.multi_reduction <add>, %209, %cst_77 [0] : vector<16x128xf32> to vector<128xf32>
    %211 = vector.shape_cast %210 : vector<128xf32> to vector<1x128xf32>
    %c0_78 = arith.constant 0 : index
    %c0_79 = arith.constant 0 : index
    %212 = vector.load %arg13[%c0_78, %c0_79] : memref<16x128xf32, #tpu.memory_space<vmem>>, vector<1x128xf32>
    tpu.vector_store %arg13[%c0_78, %c0_79], %211 {strides = array<i32>} : memref<16x128xf32, #tpu.memory_space<vmem>>, vector<1x128xf32>,
    %213 = vector.extract_strided_slice %94 {offsets = [0, 1], sizes = [16, 1], strides = [1, 1]} : vector<16x16xf32> to vector<16x1xf32>
    %214 = vector.extract_strided_slice %96 {offsets = [1, 0], sizes = [1, 128], strides = [1, 1]} : vector<16x128xf32> to vector<1x128xf32>
    %215 = vector.broadcast %213 : vector<16x1xf32> to vector<16x128xf32>
    %216 = vector.broadcast %214 : vector<1x128xf32> to vector<16x128xf32>
    %217 = arith.mulf %215, %216 : vector<16x128xf32>
    %c1_80 = arith.constant 1 : index
    %c0_81 = arith.constant 0 : index
    %c0_82 = arith.constant 0 : index
    %218 = vector.load %arg12[%c1_80, %c0_81, %c0_82] : memref<16x16x128xf32, #tpu.memory_space<vmem>>, vector<1x16x128xf32>
    %219 = vector.shape_cast %218 : vector<1x16x128xf32> to vector<16x128xf32>
    %220 = arith.mulf %219, %206 : vector<16x128xf32>
    %221 = arith.addf %220, %217 : vector<16x128xf32>
    %222 = vector.extract_strided_slice %95 {offsets = [0, 1], sizes = [16, 1], strides = [1, 1]} : vector<16x16xf32> to vector<16x1xf32>
    %223 = vector.broadcast %222 : vector<16x1xf32> to vector<16x128xf32>
    %224 = arith.mulf %223, %221 : vector<16x128xf32>
    %cst_83 = arith.constant dense<0.000000e+00> : vector<128xf32>
    %225 = vector.multi_reduction <add>, %224, %cst_83 [0] : vector<16x128xf32> to vector<128xf32>
    %226 = vector.shape_cast %225 : vector<128xf32> to vector<1x128xf32>
    %c1_84 = arith.constant 1 : index
    %c0_85 = arith.constant 0 : index
    %227 = vector.load %arg13[%c1_84, %c0_85] : memref<16x128xf32, #tpu.memory_space<vmem>>, vector<1x128xf32>
    tpu.vector_store %arg13[%c1_84, %c0_85], %226 {strides = array<i32>} : memref<16x128xf32, #tpu.memory_space<vmem>>, vector<1x128xf32>,
    %228 = vector.extract_strided_slice %94 {offsets = [0, 2], sizes = [16, 1], strides = [1, 1]} : vector<16x16xf32> to vector<16x1xf32>
    %229 = vector.extract_strided_slice %96 {offsets = [2, 0], sizes = [1, 128], strides = [1, 1]} : vector<16x128xf32> to vector<1x128xf32>
    %230 = vector.broadcast %228 : vector<16x1xf32> to vector<16x128xf32>
    %231 = vector.broadcast %229 : vector<1x128xf32> to vector<16x128xf32>
    %232 = arith.mulf %230, %231 : vector<16x128xf32>
    %c2_86 = arith.constant 2 : index
    %c0_87 = arith.constant 0 : index
    %c0_88 = arith.constant 0 : index
    %233 = vector.load %arg12[%c2_86, %c0_87, %c0_88] : memref<16x16x128xf32, #tpu.memory_space<vmem>>, vector<1x16x128xf32>
    %234 = vector.shape_cast %233 : vector<1x16x128xf32> to vector<16x128xf32>
    %235 = arith.mulf %234, %221 : vector<16x128xf32>
    %236 = arith.addf %235, %232 : vector<16x128xf32>
    %237 = vector.extract_strided_slice %95 {offsets = [0, 2], sizes = [16, 1], strides = [1, 1]} : vector<16x16xf32> to vector<16x1xf32>
    %238 = vector.broadcast %237 : vector<16x1xf32> to vector<16x128xf32>
    %239 = arith.mulf %238, %236 : vector<16x128xf32>
    %cst_89 = arith.constant dense<0.000000e+00> : vector<128xf32>
    %240 = vector.multi_reduction <add>, %239, %cst_89 [0] : vector<16x128xf32> to vector<128xf32>
    %241 = vector.shape_cast %240 : vector<128xf32> to vector<1x128xf32>
    %c2_90 = arith.constant 2 : index
    %c0_91 = arith.constant 0 : index
    %242 = vector.load %arg13[%c2_90, %c0_91] : memref<16x128xf32, #tpu.memory_space<vmem>>, vector<1x128xf32>
    tpu.vector_store %arg13[%c2_90, %c0_91], %241 {strides = array<i32>} : memref<16x128xf32, #tpu.memory_space<vmem>>, vector<1x128xf32>,
    %243 = vector.extract_strided_slice %94 {offsets = [0, 3], sizes = [16, 1], strides = [1, 1]} : vector<16x16xf32> to vector<16x1xf32>
    %244 = vector.extract_strided_slice %96 {offsets = [3, 0], sizes = [1, 128], strides = [1, 1]} : vector<16x128xf32> to vector<1x128xf32>
    %245 = vector.broadcast %243 : vector<16x1xf32> to vector<16x128xf32>
    %246 = vector.broadcast %244 : vector<1x128xf32> to vector<16x128xf32>
    %247 = arith.mulf %245, %246 : vector<16x128xf32>
    %c3_92 = arith.constant 3 : index
    %c0_93 = arith.constant 0 : index
    %c0_94 = arith.constant 0 : index
    %248 = vector.load %arg12[%c3_92, %c0_93, %c0_94] : memref<16x16x128xf32, #tpu.memory_space<vmem>>, vector<1x16x128xf32>
    %249 = vector.shape_cast %248 : vector<1x16x128xf32> to vector<16x128xf32>
    %250 = arith.mulf %249, %236 : vector<16x128xf32>
    %251 = arith.addf %250, %247 : vector<16x128xf32>
    %252 = vector.extract_strided_slice %95 {offsets = [0, 3], sizes = [16, 1], strides = [1, 1]} : vector<16x16xf32> to vector<16x1xf32>
    %253 = vector.broadcast %252 : vector<16x1xf32> to vector<16x128xf32>
    %254 = arith.mulf %253, %251 : vector<16x128xf32>
    %cst_95 = arith.constant dense<0.000000e+00> : vector<128xf32>
    %255 = vector.multi_reduction <add>, %254, %cst_95 [0] : vector<16x128xf32> to vector<128xf32>
    %256 = vector.shape_cast %255 : vector<128xf32> to vector<1x128xf32>
    %c3_96 = arith.constant 3 : index
    %c0_97 = arith.constant 0 : index
    %257 = vector.load %arg13[%c3_96, %c0_97] : memref<16x128xf32, #tpu.memory_space<vmem>>, vector<1x128xf32>
    tpu.vector_store %arg13[%c3_96, %c0_97], %256 {strides = array<i32>} : memref<16x128xf32, #tpu.memory_space<vmem>>, vector<1x128xf32>,
    %258 = vector.extract_strided_slice %94 {offsets = [0, 4], sizes = [16, 1], strides = [1, 1]} : vector<16x16xf32> to vector<16x1xf32>
    %259 = vector.extract_strided_slice %96 {offsets = [4, 0], sizes = [1, 128], strides = [1, 1]} : vector<16x128xf32> to vector<1x128xf32>
    %260 = vector.broadcast %258 : vector<16x1xf32> to vector<16x128xf32>
    %261 = vector.broadcast %259 : vector<1x128xf32> to vector<16x128xf32>
    %262 = arith.mulf %260, %261 : vector<16x128xf32>
    %c4_98 = arith.constant 4 : index
    %c0_99 = arith.constant 0 : index
    %c0_100 = arith.constant 0 : index
    %263 = vector.load %arg12[%c4_98, %c0_99, %c0_100] : memref<16x16x128xf32, #tpu.memory_space<vmem>>, vector<1x16x128xf32>
    %264 = vector.shape_cast %263 : vector<1x16x128xf32> to vector<16x128xf32>
    %265 = arith.mulf %264, %251 : vector<16x128xf32>
    %266 = arith.addf %265, %262 : vector<16x128xf32>
    %267 = vector.extract_strided_slice %95 {offsets = [0, 4], sizes = [16, 1], strides = [1, 1]} : vector<16x16xf32> to vector<16x1xf32>
    %268 = vector.broadcast %267 : vector<16x1xf32> to vector<16x128xf32>
    %269 = arith.mulf %268, %266 : vector<16x128xf32>
    %cst_101 = arith.constant dense<0.000000e+00> : vector<128xf32>
    %270 = vector.multi_reduction <add>, %269, %cst_101 [0] : vector<16x128xf32> to vector<128xf32>
    %271 = vector.shape_cast %270 : vector<128xf32> to vector<1x128xf32>
    %c4_102 = arith.constant 4 : index
    %c0_103 = arith.constant 0 : index
    %272 = vector.load %arg13[%c4_102, %c0_103] : memref<16x128xf32, #tpu.memory_space<vmem>>, vector<1x128xf32>
    tpu.vector_store %arg13[%c4_102, %c0_103], %271 {strides = array<i32>} : memref<16x128xf32, #tpu.memory_space<vmem>>, vector<1x128xf32>,
    %273 = vector.extract_strided_slice %94 {offsets = [0, 5], sizes = [16, 1], strides = [1, 1]} : vector<16x16xf32> to vector<16x1xf32>
    %274 = vector.extract_strided_slice %96 {offsets = [5, 0], sizes = [1, 128], strides = [1, 1]} : vector<16x128xf32> to vector<1x128xf32>
    %275 = vector.broadcast %273 : vector<16x1xf32> to vector<16x128xf32>
    %276 = vector.broadcast %274 : vector<1x128xf32> to vector<16x128xf32>
    %277 = arith.mulf %275, %276 : vector<16x128xf32>
    %c5_104 = arith.constant 5 : index
    %c0_105 = arith.constant 0 : index
    %c0_106 = arith.constant 0 : index
    %278 = vector.load %arg12[%c5_104, %c0_105, %c0_106] : memref<16x16x128xf32, #tpu.memory_space<vmem>>, vector<1x16x128xf32>
    %279 = vector.shape_cast %278 : vector<1x16x128xf32> to vector<16x128xf32>
    %280 = arith.mulf %279, %266 : vector<16x128xf32>
    %281 = arith.addf %280, %277 : vector<16x128xf32>
    %282 = vector.extract_strided_slice %95 {offsets = [0, 5], sizes = [16, 1], strides = [1, 1]} : vector<16x16xf32> to vector<16x1xf32>
    %283 = vector.broadcast %282 : vector<16x1xf32> to vector<16x128xf32>
    %284 = arith.mulf %283, %281 : vector<16x128xf32>
    %cst_107 = arith.constant dense<0.000000e+00> : vector<128xf32>
    %285 = vector.multi_reduction <add>, %284, %cst_107 [0] : vector<16x128xf32> to vector<128xf32>
    %286 = vector.shape_cast %285 : vector<128xf32> to vector<1x128xf32>
    %c5_108 = arith.constant 5 : index
    %c0_109 = arith.constant 0 : index
    %287 = vector.load %arg13[%c5_108, %c0_109] : memref<16x128xf32, #tpu.memory_space<vmem>>, vector<1x128xf32>
    tpu.vector_store %arg13[%c5_108, %c0_109], %286 {strides = array<i32>} : memref<16x128xf32, #tpu.memory_space<vmem>>, vector<1x128xf32>,
    %288 = vector.extract_strided_slice %94 {offsets = [0, 6], sizes = [16, 1], strides = [1, 1]} : vector<16x16xf32> to vector<16x1xf32>
    %289 = vector.extract_strided_slice %96 {offsets = [6, 0], sizes = [1, 128], strides = [1, 1]} : vector<16x128xf32> to vector<1x128xf32>
    %290 = vector.broadcast %288 : vector<16x1xf32> to vector<16x128xf32>
    %291 = vector.broadcast %289 : vector<1x128xf32> to vector<16x128xf32>
    %292 = arith.mulf %290, %291 : vector<16x128xf32>
    %c6_110 = arith.constant 6 : index
    %c0_111 = arith.constant 0 : index
    %c0_112 = arith.constant 0 : index
    %293 = vector.load %arg12[%c6_110, %c0_111, %c0_112] : memref<16x16x128xf32, #tpu.memory_space<vmem>>, vector<1x16x128xf32>
    %294 = vector.shape_cast %293 : vector<1x16x128xf32> to vector<16x128xf32>
    %295 = arith.mulf %294, %281 : vector<16x128xf32>
    %296 = arith.addf %295, %292 : vector<16x128xf32>
    %297 = vector.extract_strided_slice %95 {offsets = [0, 6], sizes = [16, 1], strides = [1, 1]} : vector<16x16xf32> to vector<16x1xf32>
    %298 = vector.broadcast %297 : vector<16x1xf32> to vector<16x128xf32>
    %299 = arith.mulf %298, %296 : vector<16x128xf32>
    %cst_113 = arith.constant dense<0.000000e+00> : vector<128xf32>
    %300 = vector.multi_reduction <add>, %299, %cst_113 [0] : vector<16x128xf32> to vector<128xf32>
    %301 = vector.shape_cast %300 : vector<128xf32> to vector<1x128xf32>
    %c6_114 = arith.constant 6 : index
    %c0_115 = arith.constant 0 : index
    %302 = vector.load %arg13[%c6_114, %c0_115] : memref<16x128xf32, #tpu.memory_space<vmem>>, vector<1x128xf32>
    tpu.vector_store %arg13[%c6_114, %c0_115], %301 {strides = array<i32>} : memref<16x128xf32, #tpu.memory_space<vmem>>, vector<1x128xf32>,
    %303 = vector.extract_strided_slice %94 {offsets = [0, 7], sizes = [16, 1], strides = [1, 1]} : vector<16x16xf32> to vector<16x1xf32>
    %304 = vector.extract_strided_slice %96 {offsets = [7, 0], sizes = [1, 128], strides = [1, 1]} : vector<16x128xf32> to vector<1x128xf32>
    %305 = vector.broadcast %303 : vector<16x1xf32> to vector<16x128xf32>
    %306 = vector.broadcast %304 : vector<1x128xf32> to vector<16x128xf32>
    %307 = arith.mulf %305, %306 : vector<16x128xf32>
    %c7_116 = arith.constant 7 : index
    %c0_117 = arith.constant 0 : index
    %c0_118 = arith.constant 0 : index
    %308 = vector.load %arg12[%c7_116, %c0_117, %c0_118] : memref<16x16x128xf32, #tpu.memory_space<vmem>>, vector<1x16x128xf32>
    %309 = vector.shape_cast %308 : vector<1x16x128xf32> to vector<16x128xf32>
    %310 = arith.mulf %309, %296 : vector<16x128xf32>
    %311 = arith.addf %310, %307 : vector<16x128xf32>
    %312 = vector.extract_strided_slice %95 {offsets = [0, 7], sizes = [16, 1], strides = [1, 1]} : vector<16x16xf32> to vector<16x1xf32>
    %313 = vector.broadcast %312 : vector<16x1xf32> to vector<16x128xf32>
    %314 = arith.mulf %313, %311 : vector<16x128xf32>
    %cst_119 = arith.constant dense<0.000000e+00> : vector<128xf32>
    %315 = vector.multi_reduction <add>, %314, %cst_119 [0] : vector<16x128xf32> to vector<128xf32>
    %316 = vector.shape_cast %315 : vector<128xf32> to vector<1x128xf32>
    %c7_120 = arith.constant 7 : index
    %c0_121 = arith.constant 0 : index
    %317 = vector.load %arg13[%c7_120, %c0_121] : memref<16x128xf32, #tpu.memory_space<vmem>>, vector<1x128xf32>
    tpu.vector_store %arg13[%c7_120, %c0_121], %316 {strides = array<i32>} : memref<16x128xf32, #tpu.memory_space<vmem>>, vector<1x128xf32>,
    %cst_122 = arith.constant 0.000000e+00 : f32
    %318 = vector.broadcast %cst_122 : f32 to vector<16x128xf32>
    %319 = vector.extract_strided_slice %94 {offsets = [0, 8], sizes = [16, 1], strides = [1, 1]} : vector<16x16xf32> to vector<16x1xf32>
    %320 = vector.extract_strided_slice %96 {offsets = [8, 0], sizes = [1, 128], strides = [1, 1]} : vector<16x128xf32> to vector<1x128xf32>
    %321 = vector.broadcast %319 : vector<16x1xf32> to vector<16x128xf32>
    %322 = vector.broadcast %320 : vector<1x128xf32> to vector<16x128xf32>
    %323 = arith.mulf %321, %322 : vector<16x128xf32>
    %c8_123 = arith.constant 8 : index
    %c0_124 = arith.constant 0 : index
    %c0_125 = arith.constant 0 : index
    %324 = vector.load %arg12[%c8_123, %c0_124, %c0_125] : memref<16x16x128xf32, #tpu.memory_space<vmem>>, vector<1x16x128xf32>
    %325 = vector.shape_cast %324 : vector<1x16x128xf32> to vector<16x128xf32>
    %326 = arith.mulf %325, %318 : vector<16x128xf32>
    %327 = arith.addf %326, %323 : vector<16x128xf32>
    %328 = vector.extract_strided_slice %95 {offsets = [0, 8], sizes = [16, 1], strides = [1, 1]} : vector<16x16xf32> to vector<16x1xf32>
    %329 = vector.broadcast %328 : vector<16x1xf32> to vector<16x128xf32>
    %330 = arith.mulf %329, %327 : vector<16x128xf32>
    %cst_126 = arith.constant dense<0.000000e+00> : vector<128xf32>
    %331 = vector.multi_reduction <add>, %330, %cst_126 [0] : vector<16x128xf32> to vector<128xf32>
    %332 = vector.shape_cast %331 : vector<128xf32> to vector<1x128xf32>
    %c8_127 = arith.constant 8 : index
    %c0_128 = arith.constant 0 : index
    %333 = vector.load %arg13[%c8_127, %c0_128] : memref<16x128xf32, #tpu.memory_space<vmem>>, vector<1x128xf32>
    tpu.vector_store %arg13[%c8_127, %c0_128], %332 {strides = array<i32>} : memref<16x128xf32, #tpu.memory_space<vmem>>, vector<1x128xf32>,
    %334 = vector.extract_strided_slice %94 {offsets = [0, 9], sizes = [16, 1], strides = [1, 1]} : vector<16x16xf32> to vector<16x1xf32>
    %335 = vector.extract_strided_slice %96 {offsets = [9, 0], sizes = [1, 128], strides = [1, 1]} : vector<16x128xf32> to vector<1x128xf32>
    %336 = vector.broadcast %334 : vector<16x1xf32> to vector<16x128xf32>
    %337 = vector.broadcast %335 : vector<1x128xf32> to vector<16x128xf32>
    %338 = arith.mulf %336, %337 : vector<16x128xf32>
    %c9_129 = arith.constant 9 : index
    %c0_130 = arith.constant 0 : index
    %c0_131 = arith.constant 0 : index
    %339 = vector.load %arg12[%c9_129, %c0_130, %c0_131] : memref<16x16x128xf32, #tpu.memory_space<vmem>>, vector<1x16x128xf32>
    %340 = vector.shape_cast %339 : vector<1x16x128xf32> to vector<16x128xf32>
    %341 = arith.mulf %340, %327 : vector<16x128xf32>
    %342 = arith.addf %341, %338 : vector<16x128xf32>
    %343 = vector.extract_strided_slice %95 {offsets = [0, 9], sizes = [16, 1], strides = [1, 1]} : vector<16x16xf32> to vector<16x1xf32>
    %344 = vector.broadcast %343 : vector<16x1xf32> to vector<16x128xf32>
    %345 = arith.mulf %344, %342 : vector<16x128xf32>
    %cst_132 = arith.constant dense<0.000000e+00> : vector<128xf32>
    %346 = vector.multi_reduction <add>, %345, %cst_132 [0] : vector<16x128xf32> to vector<128xf32>
    %347 = vector.shape_cast %346 : vector<128xf32> to vector<1x128xf32>
    %c9_133 = arith.constant 9 : index
    %c0_134 = arith.constant 0 : index
    %348 = vector.load %arg13[%c9_133, %c0_134] : memref<16x128xf32, #tpu.memory_space<vmem>>, vector<1x128xf32>
    tpu.vector_store %arg13[%c9_133, %c0_134], %347 {strides = array<i32>} : memref<16x128xf32, #tpu.memory_space<vmem>>, vector<1x128xf32>,
    %349 = vector.extract_strided_slice %94 {offsets = [0, 10], sizes = [16, 1], strides = [1, 1]} : vector<16x16xf32> to vector<16x1xf32>
    %350 = vector.extract_strided_slice %96 {offsets = [10, 0], sizes = [1, 128], strides = [1, 1]} : vector<16x128xf32> to vector<1x128xf32>
    %351 = vector.broadcast %349 : vector<16x1xf32> to vector<16x128xf32>
    %352 = vector.broadcast %350 : vector<1x128xf32> to vector<16x128xf32>
    %353 = arith.mulf %351, %352 : vector<16x128xf32>
    %c10_135 = arith.constant 10 : index
    %c0_136 = arith.constant 0 : index
    %c0_137 = arith.constant 0 : index
    %354 = vector.load %arg12[%c10_135, %c0_136, %c0_137] : memref<16x16x128xf32, #tpu.memory_space<vmem>>, vector<1x16x128xf32>
    %355 = vector.shape_cast %354 : vector<1x16x128xf32> to vector<16x128xf32>
    %356 = arith.mulf %355, %342 : vector<16x128xf32>
    %357 = arith.addf %356, %353 : vector<16x128xf32>
    %358 = vector.extract_strided_slice %95 {offsets = [0, 10], sizes = [16, 1], strides = [1, 1]} : vector<16x16xf32> to vector<16x1xf32>
    %359 = vector.broadcast %358 : vector<16x1xf32> to vector<16x128xf32>
    %360 = arith.mulf %359, %357 : vector<16x128xf32>
    %cst_138 = arith.constant dense<0.000000e+00> : vector<128xf32>
    %361 = vector.multi_reduction <add>, %360, %cst_138 [0] : vector<16x128xf32> to vector<128xf32>
    %362 = vector.shape_cast %361 : vector<128xf32> to vector<1x128xf32>
    %c10_139 = arith.constant 10 : index
    %c0_140 = arith.constant 0 : index
    %363 = vector.load %arg13[%c10_139, %c0_140] : memref<16x128xf32, #tpu.memory_space<vmem>>, vector<1x128xf32>
    tpu.vector_store %arg13[%c10_139, %c0_140], %362 {strides = array<i32>} : memref<16x128xf32, #tpu.memory_space<vmem>>, vector<1x128xf32>,
    %364 = vector.extract_strided_slice %94 {offsets = [0, 11], sizes = [16, 1], strides = [1, 1]} : vector<16x16xf32> to vector<16x1xf32>
    %365 = vector.extract_strided_slice %96 {offsets = [11, 0], sizes = [1, 128], strides = [1, 1]} : vector<16x128xf32> to vector<1x128xf32>
    %366 = vector.broadcast %364 : vector<16x1xf32> to vector<16x128xf32>
    %367 = vector.broadcast %365 : vector<1x128xf32> to vector<16x128xf32>
    %368 = arith.mulf %366, %367 : vector<16x128xf32>
    %c11_141 = arith.constant 11 : index
    %c0_142 = arith.constant 0 : index
    %c0_143 = arith.constant 0 : index
    %369 = vector.load %arg12[%c11_141, %c0_142, %c0_143] : memref<16x16x128xf32, #tpu.memory_space<vmem>>, vector<1x16x128xf32>
    %370 = vector.shape_cast %369 : vector<1x16x128xf32> to vector<16x128xf32>
    %371 = arith.mulf %370, %357 : vector<16x128xf32>
    %372 = arith.addf %371, %368 : vector<16x128xf32>
    %373 = vector.extract_strided_slice %95 {offsets = [0, 11], sizes = [16, 1], strides = [1, 1]} : vector<16x16xf32> to vector<16x1xf32>
    %374 = vector.broadcast %373 : vector<16x1xf32> to vector<16x128xf32>
    %375 = arith.mulf %374, %372 : vector<16x128xf32>
    %cst_144 = arith.constant dense<0.000000e+00> : vector<128xf32>
    %376 = vector.multi_reduction <add>, %375, %cst_144 [0] : vector<16x128xf32> to vector<128xf32>
    %377 = vector.shape_cast %376 : vector<128xf32> to vector<1x128xf32>
    %c11_145 = arith.constant 11 : index
    %c0_146 = arith.constant 0 : index
    %378 = vector.load %arg13[%c11_145, %c0_146] : memref<16x128xf32, #tpu.memory_space<vmem>>, vector<1x128xf32>
    tpu.vector_store %arg13[%c11_145, %c0_146], %377 {strides = array<i32>} : memref<16x128xf32, #tpu.memory_space<vmem>>, vector<1x128xf32>,
    %379 = vector.extract_strided_slice %94 {offsets = [0, 12], sizes = [16, 1], strides = [1, 1]} : vector<16x16xf32> to vector<16x1xf32>
    %380 = vector.extract_strided_slice %96 {offsets = [12, 0], sizes = [1, 128], strides = [1, 1]} : vector<16x128xf32> to vector<1x128xf32>
    %381 = vector.broadcast %379 : vector<16x1xf32> to vector<16x128xf32>
    %382 = vector.broadcast %380 : vector<1x128xf32> to vector<16x128xf32>
    %383 = arith.mulf %381, %382 : vector<16x128xf32>
    %c12_147 = arith.constant 12 : index
    %c0_148 = arith.constant 0 : index
    %c0_149 = arith.constant 0 : index
    %384 = vector.load %arg12[%c12_147, %c0_148, %c0_149] : memref<16x16x128xf32, #tpu.memory_space<vmem>>, vector<1x16x128xf32>
    %385 = vector.shape_cast %384 : vector<1x16x128xf32> to vector<16x128xf32>
    %386 = arith.mulf %385, %372 : vector<16x128xf32>
    %387 = arith.addf %386, %383 : vector<16x128xf32>
    %388 = vector.extract_strided_slice %95 {offsets = [0, 12], sizes = [16, 1], strides = [1, 1]} : vector<16x16xf32> to vector<16x1xf32>
    %389 = vector.broadcast %388 : vector<16x1xf32> to vector<16x128xf32>
    %390 = arith.mulf %389, %387 : vector<16x128xf32>
    %cst_150 = arith.constant dense<0.000000e+00> : vector<128xf32>
    %391 = vector.multi_reduction <add>, %390, %cst_150 [0] : vector<16x128xf32> to vector<128xf32>
    %392 = vector.shape_cast %391 : vector<128xf32> to vector<1x128xf32>
    %c12_151 = arith.constant 12 : index
    %c0_152 = arith.constant 0 : index
    %393 = vector.load %arg13[%c12_151, %c0_152] : memref<16x128xf32, #tpu.memory_space<vmem>>, vector<1x128xf32>
    tpu.vector_store %arg13[%c12_151, %c0_152], %392 {strides = array<i32>} : memref<16x128xf32, #tpu.memory_space<vmem>>, vector<1x128xf32>,
    %394 = vector.extract_strided_slice %94 {offsets = [0, 13], sizes = [16, 1], strides = [1, 1]} : vector<16x16xf32> to vector<16x1xf32>
    %395 = vector.extract_strided_slice %96 {offsets = [13, 0], sizes = [1, 128], strides = [1, 1]} : vector<16x128xf32> to vector<1x128xf32>
    %396 = vector.broadcast %394 : vector<16x1xf32> to vector<16x128xf32>
    %397 = vector.broadcast %395 : vector<1x128xf32> to vector<16x128xf32>
    %398 = arith.mulf %396, %397 : vector<16x128xf32>
    %c13_153 = arith.constant 13 : index
    %c0_154 = arith.constant 0 : index
    %c0_155 = arith.constant 0 : index
    %399 = vector.load %arg12[%c13_153, %c0_154, %c0_155] : memref<16x16x128xf32, #tpu.memory_space<vmem>>, vector<1x16x128xf32>
    %400 = vector.shape_cast %399 : vector<1x16x128xf32> to vector<16x128xf32>
    %401 = arith.mulf %400, %387 : vector<16x128xf32>
    %402 = arith.addf %401, %398 : vector<16x128xf32>
    %403 = vector.extract_strided_slice %95 {offsets = [0, 13], sizes = [16, 1], strides = [1, 1]} : vector<16x16xf32> to vector<16x1xf32>
    %404 = vector.broadcast %403 : vector<16x1xf32> to vector<16x128xf32>
    %405 = arith.mulf %404, %402 : vector<16x128xf32>
    %cst_156 = arith.constant dense<0.000000e+00> : vector<128xf32>
    %406 = vector.multi_reduction <add>, %405, %cst_156 [0] : vector<16x128xf32> to vector<128xf32>
    %407 = vector.shape_cast %406 : vector<128xf32> to vector<1x128xf32>
    %c13_157 = arith.constant 13 : index
    %c0_158 = arith.constant 0 : index
    %408 = vector.load %arg13[%c13_157, %c0_158] : memref<16x128xf32, #tpu.memory_space<vmem>>, vector<1x128xf32>
    tpu.vector_store %arg13[%c13_157, %c0_158], %407 {strides = array<i32>} : memref<16x128xf32, #tpu.memory_space<vmem>>, vector<1x128xf32>,
    %409 = vector.extract_strided_slice %94 {offsets = [0, 14], sizes = [16, 1], strides = [1, 1]} : vector<16x16xf32> to vector<16x1xf32>
    %410 = vector.extract_strided_slice %96 {offsets = [14, 0], sizes = [1, 128], strides = [1, 1]} : vector<16x128xf32> to vector<1x128xf32>
    %411 = vector.broadcast %409 : vector<16x1xf32> to vector<16x128xf32>
    %412 = vector.broadcast %410 : vector<1x128xf32> to vector<16x128xf32>
    %413 = arith.mulf %411, %412 : vector<16x128xf32>
    %c14_159 = arith.constant 14 : index
    %c0_160 = arith.constant 0 : index
    %c0_161 = arith.constant 0 : index
    %414 = vector.load %arg12[%c14_159, %c0_160, %c0_161] : memref<16x16x128xf32, #tpu.memory_space<vmem>>, vector<1x16x128xf32>
    %415 = vector.shape_cast %414 : vector<1x16x128xf32> to vector<16x128xf32>
    %416 = arith.mulf %415, %402 : vector<16x128xf32>
    %417 = arith.addf %416, %413 : vector<16x128xf32>
    %418 = vector.extract_strided_slice %95 {offsets = [0, 14], sizes = [16, 1], strides = [1, 1]} : vector<16x16xf32> to vector<16x1xf32>
    %419 = vector.broadcast %418 : vector<16x1xf32> to vector<16x128xf32>
    %420 = arith.mulf %419, %417 : vector<16x128xf32>
    %cst_162 = arith.constant dense<0.000000e+00> : vector<128xf32>
    %421 = vector.multi_reduction <add>, %420, %cst_162 [0] : vector<16x128xf32> to vector<128xf32>
    %422 = vector.shape_cast %421 : vector<128xf32> to vector<1x128xf32>
    %c14_163 = arith.constant 14 : index
    %c0_164 = arith.constant 0 : index
    %423 = vector.load %arg13[%c14_163, %c0_164] : memref<16x128xf32, #tpu.memory_space<vmem>>, vector<1x128xf32>
    tpu.vector_store %arg13[%c14_163, %c0_164], %422 {strides = array<i32>} : memref<16x128xf32, #tpu.memory_space<vmem>>, vector<1x128xf32>,
    %424 = vector.extract_strided_slice %94 {offsets = [0, 15], sizes = [16, 1], strides = [1, 1]} : vector<16x16xf32> to vector<16x1xf32>
    %425 = vector.extract_strided_slice %96 {offsets = [15, 0], sizes = [1, 128], strides = [1, 1]} : vector<16x128xf32> to vector<1x128xf32>
    %426 = vector.broadcast %424 : vector<16x1xf32> to vector<16x128xf32>
    %427 = vector.broadcast %425 : vector<1x128xf32> to vector<16x128xf32>
    %428 = arith.mulf %426, %427 : vector<16x128xf32>
    %c15_165 = arith.constant 15 : index
    %c0_166 = arith.constant 0 : index
    %c0_167 = arith.constant 0 : index
    %429 = vector.load %arg12[%c15_165, %c0_166, %c0_167] : memref<16x16x128xf32, #tpu.memory_space<vmem>>, vector<1x16x128xf32>
    %430 = vector.shape_cast %429 : vector<1x16x128xf32> to vector<16x128xf32>
    %431 = arith.mulf %430, %417 : vector<16x128xf32>
    %432 = arith.addf %431, %428 : vector<16x128xf32>
    %433 = vector.extract_strided_slice %95 {offsets = [0, 15], sizes = [16, 1], strides = [1, 1]} : vector<16x16xf32> to vector<16x1xf32>
    %434 = vector.broadcast %433 : vector<16x1xf32> to vector<16x128xf32>
    %435 = arith.mulf %434, %432 : vector<16x128xf32>
    %cst_168 = arith.constant dense<0.000000e+00> : vector<128xf32>
    %436 = vector.multi_reduction <add>, %435, %cst_168 [0] : vector<16x128xf32> to vector<128xf32>
    %437 = vector.shape_cast %436 : vector<128xf32> to vector<1x128xf32>
    %c15_169 = arith.constant 15 : index
    %c0_170 = arith.constant 0 : index
    %438 = vector.load %arg13[%c15_169, %c0_170] : memref<16x128xf32, #tpu.memory_space<vmem>>, vector<1x128xf32>
    tpu.vector_store %arg13[%c15_169, %c0_170], %437 {strides = array<i32>} : memref<16x128xf32, #tpu.memory_space<vmem>>, vector<1x128xf32>,
    %c0_171 = arith.constant 0 : index
    %c0_172 = arith.constant 0 : index
    %439 = vector.load %arg13[%c0_171, %c0_172] : memref<16x128xf32, #tpu.memory_space<vmem>>, vector<16x128xf32>
    %c0_173 = arith.constant 0 : index
    %c0_174 = arith.constant 0 : index
    %440 = vector.load %arg9[%c0_173, %c0_174] : memref<1x128xf32, #tpu.memory_space<vmem>>, vector<1x128xf32>
    %441 = vector.broadcast %440 : vector<1x128xf32> to vector<16x128xf32>
    %442 = arith.mulf %77, %441 : vector<16x128xf32>
    %443 = arith.addf %439, %442 : vector<16x128xf32>
    %cst_175 = arith.constant 0.000000e+00 : f32
    %444 = vector.broadcast %cst_175 : f32 to vector<16x128xf32>
    %445 = arith.subf %444, %18 : vector<16x128xf32>
    %446 = math.exp %445 : vector<16x128xf32>
    %cst_176 = arith.constant 1.000000e+00 : f32
    %447 = vector.broadcast %cst_176 : f32 to vector<16x128xf32>
    %448 = arith.addf %447, %446 : vector<16x128xf32>
    %cst_177 = arith.constant 1.000000e+00 : f32
    %449 = vector.broadcast %cst_177 : f32 to vector<16x128xf32>
    %450 = arith.divf %449, %448 : vector<16x128xf32>
    %451 = arith.mulf %18, %450 : vector<16x128xf32>
    %452 = arith.mulf %443, %451 : vector<16x128xf32>
    %453 = arith.truncf %452 : vector<16x128xf32> to vector<16x128xbf16>
    %c0_178 = arith.constant 0 : index
    %c0_179 = arith.constant 0 : index
    %454 = vector.load %arg10[%c0_178, %c0_179] : memref<128x64xbf16, #tpu.memory_space<vmem>>, vector<128x64xbf16>
    %cst_180 = arith.constant dense<0.000000e+00> : vector<16x64xf32>
    %455 = tpu.matmul %453, %454, %cst_180 {dimension_numbers = #tpu.dot_dimension_numbers<[1], [0], [0], [1], [0, 0, 1, 1], [], []>} : vector<16x128xbf16>, vector<128x64xbf16>, vector<16x64xf32> -> vector<16x64xf32>
    %456 = arith.addf %0, %455 : vector<16x64xf32>
    %c0_181 = arith.constant 0 : index
    %c0_182 = arith.constant 0 : index
    %457 = vector.load %arg11[%c0_181, %c0_182] : memref<16x64xf32, #tpu.memory_space<vmem>>, vector<16x64xf32>
    tpu.vector_store %arg11[%c0_181, %c0_182], %456 {strides = array<i32>} : memref<16x64xf32, #tpu.memory_space<vmem>>, vector<16x64xf32>,
    return
  }
  func.func @transform_0(%arg0: i32) -> (i32, i32) {
    %c0_i32 = arith.constant 0 : i32
    %c0_i32_0 = arith.constant 0 : i32
    %c0_i32_1 = arith.constant 0 : i32
    return %c0_i32, %c0_i32_0 : i32, i32
  }
  func.func @transform_1(%arg0: i32) -> (i32, i32) {
    %c0_i32 = arith.constant 0 : i32
    %c0_i32_0 = arith.constant 0 : i32
    %c0_i32_1 = arith.constant 0 : i32
    return %c0_i32, %c0_i32_0 : i32, i32
  }
  func.func @transform_2(%arg0: i32) -> (i32, i32) {
    %c0_i32 = arith.constant 0 : i32
    %c0_i32_0 = arith.constant 0 : i32
    %c0_i32_1 = arith.constant 0 : i32
    return %c0_i32, %c0_i32_0 : i32, i32
  }
  func.func @transform_3(%arg0: i32) -> (i32, i32) {
    %c0_i32 = arith.constant 0 : i32
    %c0_i32_0 = arith.constant 0 : i32
    %c0_i32_1 = arith.constant 0 : i32
    return %c0_i32, %c0_i32_0 : i32, i32
  }
  func.func @transform_4(%arg0: i32) -> (i32, i32) {
    %c0_i32 = arith.constant 0 : i32
    %c0_i32_0 = arith.constant 0 : i32
    %c0_i32_1 = arith.constant 0 : i32
    return %c0_i32, %c0_i32_0 : i32, i32
  }
  func.func @transform_5(%arg0: i32) -> (i32, i32) {
    %c0_i32 = arith.constant 0 : i32
    %c0_i32_0 = arith.constant 0 : i32
    %c0_i32_1 = arith.constant 0 : i32
    return %c0_i32, %c0_i32_0 : i32, i32
  }
  func.func @transform_6(%arg0: i32) -> (i32, i32) {
    %c0_i32 = arith.constant 0 : i32
    %c0_i32_0 = arith.constant 0 : i32
    %c0_i32_1 = arith.constant 0 : i32
    return %c0_i32, %c0_i32_0 : i32, i32
  }
  func.func @transform_7(%arg0: i32) -> (i32, i32) {
    %c0_i32 = arith.constant 0 : i32
    %c0_i32_0 = arith.constant 0 : i32
    %c0_i32_1 = arith.constant 0 : i32
    return %c0_i32, %c0_i32_0 : i32, i32
  }
  func.func @transform_8(%arg0: i32) -> (i32, i32) {
    %c0_i32 = arith.constant 0 : i32
    %c0_i32_0 = arith.constant 0 : i32
    %c0_i32_1 = arith.constant 0 : i32
    return %c0_i32, %c0_i32_0 : i32, i32
  }
  func.func @transform_9(%arg0: i32) -> (i32, i32) {
    %c0_i32 = arith.constant 0 : i32
    %c0_i32_0 = arith.constant 0 : i32
    %c0_i32_1 = arith.constant 0 : i32
    return %c0_i32, %c0_i32_0 : i32, i32
  }
  func.func @transform_10(%arg0: i32) -> (i32, i32) {
    %c0_i32 = arith.constant 0 : i32
    %c0_i32_0 = arith.constant 0 : i32
    %c0_i32_1 = arith.constant 0 : i32
    return %c0_i32, %c0_i32_0 : i32, i32
  }
}

</mosaic_0001>

<llo_original>
// kernel: tpu_custom_call.1
$region0: #{tpu_custom_call.1}
  #allocation0 [shape = 'u32[]', space=smem, size = 0x4, offset = 0x4, fixed_abs, tag = 'smem constant byte address 0x4 - core index']
  #allocation1 [shape = 'u32[144,128]{1,0:T(1,128)}', space=vmem, size = 0x12000, scoped, tag = 'internal scratch']
  #allocation2 [shape = 'f32[16,16,128]{2,1,0:T(8,128)}', space=vmem, size = 0x20000, scoped, tag = 'scratch operand']
  #allocation3 [shape = 'f32[16,128]{1,0:T(8,128)}', space=vmem, size = 0x2000, scoped, tag = 'scratch operand']
  %s0 = inlined_call_operand.hbm [shape: f32[16,64], index: 0, kind: input, shape index: {}, may-alias: {0,10}]
  %s1 = inlined_call_operand.vmem [shape: f32[1,64], index: 1, kind: input, shape index: {}]
  %s2 = inlined_call_operand.vmem [shape: bf16[64,256], index: 2, kind: input, shape index: {}]
  %s3 = inlined_call_operand.vmem [shape: f32[4,128], index: 3, kind: input, shape index: {}]
  %s4 = inlined_call_operand.vmem [shape: f32[1,128], index: 4, kind: input, shape index: {}]
  %s5 = inlined_call_operand.vmem [shape: f32[16,128], index: 5, kind: input, shape index: {}]
  %s6 = inlined_call_operand.vmem [shape: bf16[128,160], index: 6, kind: input, shape index: {}]
  %s7 = inlined_call_operand.vmem [shape: f32[1,128], index: 7, kind: input, shape index: {}]
  %s8 = inlined_call_operand.vmem [shape: f32[1,128], index: 8, kind: input, shape index: {}]
  %s9 = inlined_call_operand.vmem [shape: bf16[128,64], index: 9, kind: input, shape index: {}]
  %s10 = inlined_call_operand.hbm [shape: f32[16,64], index: 10, kind: output, shape index: {}, may-alias: {0,10}]
  %s11 = sld [smem:[#allocation0]]
  $region54: #{tpu_custom_call.1} parent=0
    _
  %s13 = ssub.s32 1, %s11
  %s14 = scalar_select 0, %s13, %s11
  $region1: #{tpu_custom_call.1} parent=0
    #allocation4 [shape = 'u8[8192]{0}', space=vmem, size = 0x2000, scoped, tag = 'input window, operand 0, single buffered']
    #allocation5 [shape = 's32[1]{0}', space=sflag, size = 0x4, scoped, tag = 'scoped memory for tpu_custom_call.1']
    #allocation6 [shape = 's32[1]{0}', space=sflag, size = 0x4, scoped, tag = 'scoped memory for tpu_custom_call.1']
    #allocation7 [shape = 'u8[8192]{0}', space=vmem, size = 0x2000, scoped, tag = 'output window, operand 0, single buffered']
    %15 = vsyncpa [#allocation5], 0
    %16 = vsyncpa [#allocation6], 0
    // Predicated region
    $region2: #{tpu_custom_call.1} parent=1 // pred_check
      _
    $region3: #{tpu_custom_call.1} parent=1 // pred_check_branch
      %18 = sbr.rel (0) target = $region5
    $region4: #{tpu_custom_call.1} parent=1 // pred_region
      %s20 = ssub.s32 256, 256
      %21 = vsyncadd [#allocation5], %s20
      %s22 = sshll.u32 [#allocation4], 4
      %s23 = int_to_ptr.vmem [resolvable:$true] %s22
      %28 = dma.hbm_to_vmem [thread:$0]  %s0, 256, %s23, [#allocation5], 128, 128, 8
    $region5: #{tpu_custom_call.1} parent=1 // pred_fallthru
      _
    // Predicated region
    $region6: #{tpu_custom_call.1} parent=1 // pred_check
      _
    $region7: #{tpu_custom_call.1} parent=1 // pred_check_branch
      %30 = sbr.rel (0) target = $region9
    $region8: #{tpu_custom_call.1} parent=1 // pred_region
      _
    $region9: #{tpu_custom_call.1} parent=1 // pred_fallthru
      _
    // Predicated region
    $region10: #{tpu_custom_call.1} parent=1 // pred_check
      _
    $region11: #{tpu_custom_call.1} parent=1 // pred_check_branch
      %32 = sbr.rel (0) target = $region13
    $region12: #{tpu_custom_call.1} parent=1 // pred_region
      _
    $region13: #{tpu_custom_call.1} parent=1 // pred_fallthru
      _
    // Predicated region
    $region14: #{tpu_custom_call.1} parent=1 // pred_check
      _
    $region15: #{tpu_custom_call.1} parent=1 // pred_check_branch
      %34 = sbr.rel (0) target = $region17
    $region16: #{tpu_custom_call.1} parent=1 // pred_region
      _
    $region17: #{tpu_custom_call.1} parent=1 // pred_fallthru
      _
    // Predicated region
    $region18: #{tpu_custom_call.1} parent=1 // pred_check
      _
    $region19: #{tpu_custom_call.1} parent=1 // pred_check_branch
      %36 = sbr.rel (0) target = $region21
    $region20: #{tpu_custom_call.1} parent=1 // pred_region
      _
    $region21: #{tpu_custom_call.1} parent=1 // pred_fallthru
      _
    // Predicated region
    $region22: #{tpu_custom_call.1} parent=1 // pred_check
      _
    $region23: #{tpu_custom_call.1} parent=1 // pred_check_branch
      %38 = sbr.rel (0) target = $region25
    $region24: #{tpu_custom_call.1} parent=1 // pred_region
      _
    $region25: #{tpu_custom_call.1} parent=1 // pred_fallthru
      _
    // Predicated region
    $region26: #{tpu_custom_call.1} parent=1 // pred_check
      _
    $region27: #{tpu_custom_call.1} parent=1 // pred_check_branch
      %40 = sbr.rel (0) target = $region29
    $region28: #{tpu_custom_call.1} parent=1 // pred_region
      _
    $region29: #{tpu_custom_call.1} parent=1 // pred_fallthru
      _
    // Predicated region
    $region30: #{tpu_custom_call.1} parent=1 // pred_check
      _
    $region31: #{tpu_custom_call.1} parent=1 // pred_check_branch
      %42 = sbr.rel (0) target = $region33
    $region32: #{tpu_custom_call.1} parent=1 // pred_region
      _
    $region33: #{tpu_custom_call.1} parent=1 // pred_fallthru
      _
    // Predicated region
    $region34: #{tpu_custom_call.1} parent=1 // pred_check
      _
    $region35: #{tpu_custom_call.1} parent=1 // pred_check_branch
      %44 = sbr.rel (0) target = $region37
    $region36: #{tpu_custom_call.1} parent=1 // pred_region
      _
    $region37: #{tpu_custom_call.1} parent=1 // pred_fallthru
      _
    // Predicated region
    $region38: #{tpu_custom_call.1} parent=1 // pred_check
      _
    $region39: #{tpu_custom_call.1} parent=1 // pred_check_branch
      %46 = sbr.rel (0) target = $region41
    $region40: #{tpu_custom_call.1} parent=1 // pred_region
      _
    $region41: #{tpu_custom_call.1} parent=1 // pred_fallthru
      _
    // Predicated region
    $region42: #{tpu_custom_call.1} parent=1 // pred_check
      _
    $region43: #{tpu_custom_call.1} parent=1 // pred_check_branch
      %48 = sbr.rel (0) target = $region45
    $region44: #{tpu_custom_call.1} parent=1 // pred_region
      %49 = dma.done [#allocation5], 256
    $region45: #{tpu_custom_call.1} parent=1 // pred_fallthru
      _
    %v51 = vld [vmem:[#allocation4] sm:$0xff]
    %v52 = vld [vmem:[#allocation4 + $0x8] sm:$0xff]
    %v53 = vmul.f32 %v51, %v51
    %v54 = vmul.f32 %v52, %v52
    %vm55 = vcmask 523264
    %v56 = vsel %vm55, %v53, 0.0
    %57 = vadd.xlane.f32.xlu0 %v56
    %v58 = vpop.xlane.xlu0 %57
    %v59 = vsel %vm55, %v54, 0.0
    %60 = vadd.xlane.f32.xlu0 %v59
    %v61 = vpop.xlane.xlu0 %60
    %v62 = vrcp.pop 64.0
    %v63 = vmul.f32 %v58, %v62
    %v64 = vmul.f32 %v61, %v62
    %v65 = vadd.f32 %v63, 1e-05
    %v66 = vadd.f32 %v64, 1e-05
    %v67 = vrsqrt.pop %v65
    %v68 = vrsqrt.pop %v66
    %v69 = vmul.f32 %v51, %v67
    %v70 = vmul.f32 %v52, %v68
    %v71 = vld [vmem:[%s1] sm:$0x1]
    %v73 = vlaneseq
    %v74 = vshrl.u32 %v73, 7
    %v75 = vsub.s32 0, %v74
    %v76 = vrot.slane %v71, %v75
    %v78 = vmul.f32 %v69, %v76
    %v79 = vmul.f32 %v70, %v76
    %v80 = vpack.c.bf16 %v79, %v78
    %v81 = vld [vmem:[%s2] sm:$0xff]
    %v82 = vld [vmem:[%s2 + $0x8] sm:$0xff]
    %v83 = vld [vmem:[%s2 + $0x10] sm:$0xff]
    %v84 = vld [vmem:[%s2 + $0x18] sm:$0xff]
    %v85 = vld [vmem:[%s2 + $0x20] sm:$0xff]
    %v86 = vld [vmem:[%s2 + $0x28] sm:$0xff]
    %v87 = vld [vmem:[%s2 + $0x30] sm:$0xff]
    %v88 = vld [vmem:[%s2 + $0x38] sm:$0xff]
    %v97 = vunpack.c.l.b16 %v81
    %v98 = vunpack.c.h.b16 %v81
    %v99 = vunpack.c.l.b16 %v82
    %v100 = vunpack.c.h.b16 %v82
    %v101 = vunpack.c.l.b16 %v83
    %v102 = vunpack.c.h.b16 %v83
    %v103 = vunpack.c.l.b16 %v84
    %v104 = vunpack.c.h.b16 %v84
    %v105 = vunpack.c.l.b16 %v85
    %v106 = vunpack.c.h.b16 %v85
    %v107 = vunpack.c.l.b16 %v86
    %v108 = vunpack.c.h.b16 %v86
    %v109 = vunpack.c.l.b16 %v87
    %v110 = vunpack.c.h.b16 %v87
    %v111 = vunpack.c.l.b16 %v88
    %v112 = vunpack.c.h.b16 %v88
    %v113 = vpack.c.b16 %v99, %v97
    %v114 = vpack.c.b16 %v100, %v98
    %v115 = vpack.c.b16 %v103, %v101
    %v116 = vpack.c.b16 %v104, %v102
    %v117 = vpack.c.b16 %v107, %v105
    %v118 = vpack.c.b16 %v108, %v106
    %v119 = vpack.c.b16 %v111, %v109
    %v120 = vpack.c.b16 %v112, %v110
    %v130 = vsel %vm55, %v80, 0
    %132 = vmatprep.subr.bf16.mxu0 0
    %133 = vmatpush1.bf16.msra.mxu0 0
    %134 = vmatprep.subr.bf16.mxu0 0
    %135 = vmatpush1.bf16.msra.mxu0 0
    %136 = vmatprep.subr.bf16.mxu0 0
    %137 = vmatpush1.bf16.msra.mxu0 0
    %138 = vmatprep.subr.bf16.mxu0 0
    %139 = vmatpush1.bf16.msra.mxu0 0
    %140 = vmatprep.subr.bf16.mxu0 %v120
    %141 = vmatpush1.bf16.msra.mxu0 %v119
    %142 = vmatprep.subr.bf16.mxu0 %v118
    %143 = vmatpush1.bf16.msra.mxu0 %v117
    %144 = vmatprep.subr.bf16.mxu0 %v116
    %145 = vmatpush1.bf16.msra.mxu0 %v115
    %146 = vmatprep.subr.bf16.mxu0 %v114
    %147 = vmatpush1.bf16.msra.mxu0 %v113
    %148 = vmatprep.subr.bf16.mxu0 0
    %149 = vmatpush2.bf16.msra.mxu0 0
    %150 = vmatprep.subr.bf16.mxu0 0
    %151 = vmatpush2.bf16.msra.mxu0 0
    %152 = vmatprep.subr.bf16.mxu0 0
    %153 = vmatpush2.bf16.msra.mxu0 0
    %154 = vmatprep.subr.bf16.mxu0 0
    %155 = vmatpush2.bf16.msra.mxu0 0
    %156 = vmatprep.subr.bf16.mxu0 0
    %157 = vmatpush2.bf16.msra.mxu0 0
    %158 = vmatprep.subr.bf16.mxu0 0
    %159 = vmatpush2.bf16.msra.mxu0 0
    %160 = vmatprep.subr.bf16.mxu0 0
    %161 = vmatpush2.bf16.msra.mxu0 0
    %162 = vmatprep.subr.bf16.mxu0 0
    %163 = vmatpush2.bf16.msra.mxu0 0
    %164 = vmatprep.mubr.bf16.mxu0 0
    %165 = vmatmul.mubr.bf16.gmra.mxu0 %v130
    %v166 = vpop.f32.mrf.mxu0
    %v167 = vadd.f32 0.0, %v166
    %v168 = vpop.f32.mrf.mxu0
    %v169 = vadd.f32 0.0, %v168
    %v170 = vpop.f32.mrf.mxu0
    %v171 = vadd.f32 0.0, %v170
    %v172 = vpop.f32.mrf.mxu0
    %v173 = vadd.f32 0.0, %v172
    %174 = vdwg.mxu0
    %v175 = vld [vmem:[%s3] sm:$0xf]
    %v176 = vlaneseq
    %v177 = vshrl.u32 %v176, 7
    %v178 = vadd.s32 %v177, 8
    %vm179 = vcmp.lt.s32.totalorder %v177, 0
    %v180 = vsub.s32 0, %v177
    %v181 = vsel %vm179, %v180, %v177
    %v182 = vshrl.u32 %v181, 3
    %v183 = vand.u32 %v181, 7
    %v184 = vsub.s32 0, %v183
    %v185 = vsel %vm179, %v184, %v183
    %vm186 = vcmp.lt.s32.totalorder %v178, 0
    %v187 = vsub.s32 0, %v178
    %v188 = vsel %vm186, %v187, %v178
    %v189 = vshrl.u32 %v188, 3
    %v190 = vand.u32 %v188, 7
    %v191 = vsub.s32 0, %v190
    %v192 = vsel %vm186, %v191, %v190
    %vm193 = vcmp.ne.s32.totalorder %v185, 0
    %vm194 = vcmp.ne.s32.totalorder %v192, 0
    %vm195 = vcmp.lt.s32.totalorder %v185, 0
    %vm196 = vcmp.lt.s32.totalorder %v192, 0
    %vm197 = vmand %vm195, %vm193
    %vm198 = vmand %vm196, %vm194
    %v199 = vadd.s32 %v185, 8
    %v200 = vadd.s32 %v192, 8
    %v201 = vsel %vm197, %v199, %v185
    %v202 = vsel %vm198, %v200, %v192
    %v203 = vlaneseq
    %v204 = vshrl.u32 %v203, 7
    %v205 = vsub.s32 3, %v204
    %v206 = vrot.slane %v175, %v205
    %v207 = vmul.f32 %v167, %v206
    %v208 = vmul.f32 %v171, %v206
    %v209 = vld [vmem:[%s4] sm:$0x1]
    %v211 = vlaneseq
    %v212 = vshrl.u32 %v211, 7
    %v213 = vsub.s32 0, %v212
    %v214 = vrot.slane %v209, %v213
    %v216 = vadd.f32 %v207, %v214
    %v217 = vadd.f32 %v208, %v214
    %v218 = vrot.slane %v167, 5
    %v219 = vrot.slane %v171, 5
    %vm220 = vcmp.lt.s32.totalorder %v177, 3
    %v221 = vsel %vm220, %v218, %v219
    %v222 = vsel %vm220, %v219, %v218
    %vm223 = vcmp.ge.s32.totalorder %v201, 3
    %vm224 = vcmp.ge.s32.totalorder %v202, 3
    %v225 = vsel %vm223, %v222, 0.0
    %v226 = vsel %vm224, %v221, 0.0
    %v227 = vlaneseq
    %v228 = vshrl.u32 %v227, 7
    %v229 = vsub.s32 0, %v228
    %v230 = vrot.slane %v175, %v229
    %v231 = vmul.f32 %v225, %v230
    %v232 = vmul.f32 %v226, %v230
    %v233 = vadd.f32 %v216, %v231
    %v234 = vadd.f32 %v217, %v232
    %v235 = vrot.slane %v167, 6
    %v236 = vrot.slane %v171, 6
    %vm237 = vcmp.lt.s32.totalorder %v177, 2
    %v238 = vsel %vm237, %v235, %v236
    %v239 = vsel %vm237, %v236, %v235
    %vm240 = vcmp.ge.s32.totalorder %v201, 2
    %vm241 = vcmp.ge.s32.totalorder %v202, 2
    %v242 = vsel %vm240, %v239, 0.0
    %v243 = vsel %vm241, %v238, 0.0
    %v244 = vlaneseq
    %v245 = vshrl.u32 %v244, 7
    %v246 = vsub.s32 1, %v245
    %v247 = vrot.slane %v175, %v246
    %v248 = vmul.f32 %v242, %v247
    %v249 = vmul.f32 %v243, %v247
    %v250 = vadd.f32 %v233, %v248
    %v251 = vadd.f32 %v234, %v249
    %v252 = vrot.slane %v167, 7
    %v253 = vrot.slane %v171, 7
    %vm254 = vcmp.lt.s32.totalorder %v177, 1
    %v255 = vsel %vm254, %v252, %v253
    %v256 = vsel %vm254, %v253, %v252
    %vm257 = vcmp.ge.s32.totalorder %v201, 1
    %vm258 = vcmp.ge.s32.totalorder %v202, 1
    %v259 = vsel %vm257, %v256, 0.0
    %v260 = vsel %vm258, %v255, 0.0
    %v261 = vlaneseq
    %v262 = vshrl.u32 %v261, 7
    %v263 = vsub.s32 2, %v262
    %v264 = vrot.slane %v175, %v263
    %v265 = vmul.f32 %v259, %v264
    %v266 = vmul.f32 %v260, %v264
    %v267 = vadd.f32 %v250, %v265
    %v268 = vadd.f32 %v251, %v266
    %v269 = vsub.f32 0.0, %v267
    %v270 = vsub.f32 0.0, %v268
    %v271 = vmul.f32 %v269, 1.442695
    %v272 = vpow.pop %v271
    %v273 = vmul.f32 %v270, 1.442695
    %v274 = vpow.pop %v273
    %v275 = vadd.f32 %v272, 1.0
    %v276 = vadd.f32 %v274, 1.0
    %v277 = vrcp.pop %v275
    %v278 = vmul.f32 1.0, %v277
    %v279 = vrcp.pop %v276
    %v280 = vmul.f32 1.0, %v279
    %v281 = vmul.f32 %v267, %v278
    %v282 = vmul.f32 %v268, %v280
    %v283 = vpack.c.bf16 %v282, %v281
    %v284 = vld [vmem:[%s6] sm:$0xff]
    %v285 = vld [vmem:[%s6 + $0x8] sm:$0xff]
    %v286 = vld [vmem:[%s6 + $0x10] sm:$0xff]
    %v287 = vld [vmem:[%s6 + $0x18] sm:$0xff]
    %v288 = vld [vmem:[%s6 + $0x20] sm:$0xff]
    %v289 = vld [vmem:[%s6 + $0x28] sm:$0xff]
    %v290 = vld [vmem:[%s6 + $0x30] sm:$0xff]
    %v291 = vld [vmem:[%s6 + $0x38] sm:$0xff]
    %v292 = vld [vmem:[%s6 + $0x40] sm:$0xff]
    %v293 = vld [vmem:[%s6 + $0x48] sm:$0xff]
    %v294 = vld [vmem:[%s6 + $0x50] sm:$0xff]
    %v295 = vld [vmem:[%s6 + $0x58] sm:$0xff]
    %v296 = vld [vmem:[%s6 + $0x60] sm:$0xff]
    %v297 = vld [vmem:[%s6 + $0x68] sm:$0xff]
    %v298 = vld [vmem:[%s6 + $0x70] sm:$0xff]
    %v299 = vld [vmem:[%s6 + $0x78] sm:$0xff]
    %v316 = vunpack.c.l.b16 %v284
    %v317 = vunpack.c.h.b16 %v284
    %v318 = vunpack.c.l.b16 %v285
    %v319 = vunpack.c.h.b16 %v285
    %v320 = vunpack.c.l.b16 %v286
    %v321 = vunpack.c.h.b16 %v286
    %v322 = vunpack.c.l.b16 %v287
    %v323 = vunpack.c.h.b16 %v287
    %v324 = vunpack.c.l.b16 %v288
    %v325 = vunpack.c.h.b16 %v288
    %v326 = vunpack.c.l.b16 %v289
    %v327 = vunpack.c.h.b16 %v289
    %v328 = vunpack.c.l.b16 %v290
    %v329 = vunpack.c.h.b16 %v290
    %v330 = vunpack.c.l.b16 %v291
    %v331 = vunpack.c.h.b16 %v291
    %v332 = vunpack.c.l.b16 %v292
    %v333 = vunpack.c.h.b16 %v292
    %v334 = vunpack.c.l.b16 %v293
    %v335 = vunpack.c.h.b16 %v293
    %v336 = vunpack.c.l.b16 %v294
    %v337 = vunpack.c.h.b16 %v294
    %v338 = vunpack.c.l.b16 %v295
    %v339 = vunpack.c.h.b16 %v295
    %v340 = vunpack.c.l.b16 %v296
    %v341 = vunpack.c.h.b16 %v296
    %v342 = vunpack.c.l.b16 %v297
    %v343 = vunpack.c.h.b16 %v297
    %v344 = vunpack.c.l.b16 %v298
    %v345 = vunpack.c.h.b16 %v298
    %v346 = vunpack.c.l.b16 %v299
    %v347 = vunpack.c.h.b16 %v299
    %v348 = vpack.c.b16 %v318, %v316
    %v349 = vpack.c.b16 %v319, %v317
    %v350 = vpack.c.b16 %v322, %v320
    %v351 = vpack.c.b16 %v323, %v321
    %v352 = vpack.c.b16 %v326, %v324
    %v353 = vpack.c.b16 %v327, %v325
    %v354 = vpack.c.b16 %v330, %v328
    %v355 = vpack.c.b16 %v331, %v329
    %v356 = vpack.c.b16 %v334, %v332
    %v357 = vpack.c.b16 %v335, %v333
    %v358 = vpack.c.b16 %v338, %v336
    %v359 = vpack.c.b16 %v339, %v337
    %v360 = vpack.c.b16 %v342, %v340
    %v361 = vpack.c.b16 %v343, %v341
    %v362 = vpack.c.b16 %v346, %v344
    %v363 = vpack.c.b16 %v347, %v345
    %380 = vmatprep.subr.bf16.mxu0 %v363
    %381 = vmatpush1.bf16.msra.mxu0 %v362
    %382 = vmatprep.subr.bf16.mxu0 %v361
    %383 = vmatpush1.bf16.msra.mxu0 %v360
    %384 = vmatprep.subr.bf16.mxu0 %v359
    %385 = vmatpush1.bf16.msra.mxu0 %v358
    %386 = vmatprep.subr.bf16.mxu0 %v357
    %387 = vmatpush1.bf16.msra.mxu0 %v356
    %388 = vmatprep.subr.bf16.mxu0 %v355
    %389 = vmatpush1.bf16.msra.mxu0 %v354
    %390 = vmatprep.subr.bf16.mxu0 %v353
    %391 = vmatpush1.bf16.msra.mxu0 %v352
    %392 = vmatprep.subr.bf16.mxu0 %v351
    %393 = vmatpush1.bf16.msra.mxu0 %v350
    %394 = vmatprep.subr.bf16.mxu0 %v349
    %395 = vmatpush1.bf16.msra.mxu0 %v348
    %396 = vmatprep.subr.bf16.mxu0 0
    %397 = vmatpush2.bf16.msra.mxu0 0
    %398 = vmatprep.subr.bf16.mxu0 0
    %399 = vmatpush2.bf16.msra.mxu0 0
    %400 = vmatprep.subr.bf16.mxu0 0
    %401 = vmatpush2.bf16.msra.mxu0 0
    %402 = vmatprep.subr.bf16.mxu0 0
    %403 = vmatpush2.bf16.msra.mxu0 0
    %404 = vmatprep.subr.bf16.mxu0 0
    %405 = vmatpush2.bf16.msra.mxu0 0
    %406 = vmatprep.subr.bf16.mxu0 0
    %407 = vmatpush2.bf16.msra.mxu0 0
    %408 = vmatprep.subr.bf16.mxu0 0
    %409 = vmatpush2.bf16.msra.mxu0 0
    %410 = vmatprep.subr.bf16.mxu0 0
    %411 = vmatpush2.bf16.msra.mxu0 0
    %412 = vmatprep.mubr.bf16.mxu0 0
    %413 = vmatmul.mubr.bf16.gmra.mxu0 %v283
    %v414 = vpop.f32.mrf.mxu0
    %v415 = vadd.f32 0.0, %v414
    %v416 = vpop.f32.mrf.mxu0
    %v417 = vadd.f32 0.0, %v416
    %v418 = vpop.f32.mrf.mxu0
    %v419 = vadd.f32 0.0, %v418
    %v420 = vpop.f32.mrf.mxu0
    %v421 = vadd.f32 0.0, %v420
    %422 = vdwg.mxu0
    %v423 = vld [vmem:[%s7] sm:$0x1]
    %v425 = vlaneseq
    %v426 = vshrl.u32 %v425, 7
    %v427 = vsub.s32 0, %v426
    %v428 = vrot.slane %v423, %v427
    %v430 = vadd.f32 %v415, %v428
    %v431 = vadd.f32 %v419, %v428
    %vm432 = vcmp.gt.f32.partialorder %v430, 20.0
    %vm433 = vcmp.gt.f32.partialorder %v431, 20.0
    %v434 = vmul.f32 %v430, 1.442695
    %v435 = vpow.pop %v434
    %v436 = vmul.f32 %v431, 1.442695
    %v437 = vpow.pop %v436
    %v438 = vadd.f32 %v435, 1.0
    %v439 = vadd.f32 %v437, 1.0
    %v440 = vlog2.pop %v438
    %v441 = vmul.f32 %v440, 0.6931472
    %v442 = vlog2.pop %v439
    %v443 = vmul.f32 %v442, 0.6931472
    %v444 = vsel %vm432, %v430, %v441
    %v445 = vsel %vm433, %v431, %v443
    %446 = vxpose.xlu0.b32.start [1/16] %v417, 128
    %447 = vxpose.xlu0.b32.cont [2/16] %v421, 128
    %448 = vxpose.xlu0.b32.cont [3/16] 0.0, 128
    %449 = vxpose.xlu0.b32.cont [4/16] 0.0, 128
    %450 = vxpose.xlu0.b32.cont [5/16] 0.0, 128
    %451 = vxpose.xlu0.b32.cont [6/16] 0.0, 128
    %452 = vxpose.xlu0.b32.cont [7/16] 0.0, 128
    %453 = vxpose.xlu0.b32.cont [8/16] 0.0, 128
    %454 = vxpose.xlu0.b32.cont [9/16] 0.0, 128
    %455 = vxpose.xlu0.b32.cont [10/16] 0.0, 128
    %456 = vxpose.xlu0.b32.cont [11/16] 0.0, 128
    %457 = vxpose.xlu0.b32.cont [12/16] 0.0, 128
    %458 = vxpose.xlu0.b32.cont [13/16] 0.0, 128
    %459 = vxpose.xlu0.b32.cont [14/16] 0.0, 128
    %460 = vxpose.xlu0.b32.cont [15/16] 0.0, 128
    %461 = vxpose.xlu0.b32.end [16/16] 0.0, 128
    %v462 = vpop.trf.xlu0
    %v463 = vpop.trf.xlu0
    %v464 = vpop.trf.xlu0
    %v465 = vpop.trf.xlu0
    %v466 = vpop.trf.xlu0
    %v467 = vpop.trf.xlu0
    %v468 = vpop.trf.xlu0
    %v469 = vpop.trf.xlu0
    %v470 = vpop.trf.xlu0
    %v471 = vpop.trf.xlu0
    %v472 = vpop.trf.xlu0
    %v473 = vpop.trf.xlu0
    %v474 = vpop.trf.xlu0
    %v475 = vpop.trf.xlu0
    %v476 = vpop.trf.xlu0
    %v477 = vpop.trf.xlu0
    %v478 = vmul.f32 %v444, %v281
    %v479 = vmul.f32 %v445, %v282
    %v480 = vld [vmem:[%s5] sm:$0xff]
    %v481 = vld [vmem:[%s5 + $0x8] sm:$0xff]
    %v482 = vlaneseq
    %v483 = vshrl.u32 %v482, 7
    %v484 = vsub.s32 0, %v483
    %v485 = vrot.slane %v444, %v484
    %v486 = vmul.f32 %v485, %v480
    %v487 = vmul.f32 %v485, %v481
    %488 = vst [vmem:[#allocation2] sm:$0xff] %v486
    %489 = vst [vmem:[#allocation2 + $0x8] sm:$0xff] %v487
    %v490 = vlaneseq
    %v491 = vshrl.u32 %v490, 7
    %v492 = vsub.s32 1, %v491
    %v493 = vrot.slane %v444, %v492
    %v494 = vmul.f32 %v493, %v480
    %v495 = vmul.f32 %v493, %v481
    %s496 = scalar_lea.vmem [#allocation2], 16
    %497 = vst [vmem:[%s496] sm:$0xff] %v494
    %498 = vst [vmem:[%s496 + $0x8] sm:$0xff] %v495
    %v499 = vlaneseq
    %v500 = vshrl.u32 %v499, 7
    %v501 = vsub.s32 2, %v500
    %v502 = vrot.slane %v444, %v501
    %v503 = vmul.f32 %v502, %v480
    %v504 = vmul.f32 %v502, %v481
    %s505 = scalar_lea.vmem [#allocation2], 32
    %506 = vst [vmem:[%s505] sm:$0xff] %v503
    %507 = vst [vmem:[%s505 + $0x8] sm:$0xff] %v504
    %v508 = vlaneseq
    %v509 = vshrl.u32 %v508, 7
    %v510 = vsub.s32 3, %v509
    %v511 = vrot.slane %v444, %v510
    %v512 = vmul.f32 %v511, %v480
    %v513 = vmul.f32 %v511, %v481
    %s514 = scalar_lea.vmem [#allocation2], 48
    %515 = vst [vmem:[%s514] sm:$0xff] %v512
    %516 = vst [vmem:[%s514 + $0x8] sm:$0xff] %v513
    %v517 = vlaneseq
    %v518 = vshrl.u32 %v517, 7
    %v519 = vsub.s32 4, %v518
    %v520 = vrot.slane %v444, %v519
    %v521 = vmul.f32 %v520, %v480
    %v522 = vmul.f32 %v520, %v481
    %s523 = scalar_lea.vmem [#allocation2], 64
    %524 = vst [vmem:[%s523] sm:$0xff] %v521
    %525 = vst [vmem:[%s523 + $0x8] sm:$0xff] %v522
    %v526 = vlaneseq
    %v527 = vshrl.u32 %v526, 7
    %v528 = vsub.s32 5, %v527
    %v529 = vrot.slane %v444, %v528
    %v530 = vmul.f32 %v529, %v480
    %v531 = vmul.f32 %v529, %v481
    %s532 = scalar_lea.vmem [#allocation2], 80
    %533 = vst [vmem:[%s532] sm:$0xff] %v530
    %534 = vst [vmem:[%s532 + $0x8] sm:$0xff] %v531
    %v535 = vlaneseq
    %v536 = vshrl.u32 %v535, 7
    %v537 = vsub.s32 6, %v536
    %v538 = vrot.slane %v444, %v537
    %v539 = vmul.f32 %v538, %v480
    %v540 = vmul.f32 %v538, %v481
    %s541 = scalar_lea.vmem [#allocation2], 96
    %542 = vst [vmem:[%s541] sm:$0xff] %v539
    %543 = vst [vmem:[%s541 + $0x8] sm:$0xff] %v540
    %v544 = vlaneseq
    %v545 = vshrl.u32 %v544, 7
    %v546 = vsub.s32 7, %v545
    %v547 = vrot.slane %v444, %v546
    %v548 = vmul.f32 %v547, %v480
    %v549 = vmul.f32 %v547, %v481
    %s550 = scalar_lea.vmem [#allocation2], 112
    %551 = vst [vmem:[%s550] sm:$0xff] %v548
    %552 = vst [vmem:[%s550 + $0x8] sm:$0xff] %v549
    %v553 = vlaneseq
    %v554 = vshrl.u32 %v553, 7
    %v555 = vsub.s32 0, %v554
    %v556 = vrot.slane %v445, %v555
    %v557 = vmul.f32 %v556, %v480
    %v558 = vmul.f32 %v556, %v481
    %s559 = scalar_lea.vmem [#allocation2], 128
    %560 = vst [vmem:[%s559] sm:$0xff] %v557
    %561 = vst [vmem:[%s559 + $0x8] sm:$0xff] %v558
    %v562 = vlaneseq
    %v563 = vshrl.u32 %v562, 7
    %v564 = vsub.s32 1, %v563
    %v565 = vrot.slane %v445, %v564
    %v566 = vmul.f32 %v565, %v480
    %v567 = vmul.f32 %v565, %v481
    %s568 = scalar_lea.vmem [#allocation2], 144
    %569 = vst [vmem:[%s568] sm:$0xff] %v566
    %570 = vst [vmem:[%s568 + $0x8] sm:$0xff] %v567
    %v571 = vlaneseq
    %v572 = vshrl.u32 %v571, 7
    %v573 = vsub.s32 2, %v572
    %v574 = vrot.slane %v445, %v573
    %v575 = vmul.f32 %v574, %v480
    %v576 = vmul.f32 %v574, %v481
    %s577 = scalar_lea.vmem [#allocation2], 160
    %578 = vst [vmem:[%s577] sm:$0xff] %v575
    %579 = vst [vmem:[%s577 + $0x8] sm:$0xff] %v576
    %v580 = vlaneseq
    %v581 = vshrl.u32 %v580, 7
    %v582 = vsub.s32 3, %v581
    %v583 = vrot.slane %v445, %v582
    %v584 = vmul.f32 %v583, %v480
    %v585 = vmul.f32 %v583, %v481
    %s586 = scalar_lea.vmem [#allocation2], 176
    %587 = vst [vmem:[%s586] sm:$0xff] %v584
    %588 = vst [vmem:[%s586 + $0x8] sm:$0xff] %v585
    %v589 = vlaneseq
    %v590 = vshrl.u32 %v589, 7
    %v591 = vsub.s32 4, %v590
    %v592 = vrot.slane %v445, %v591
    %v593 = vmul.f32 %v592, %v480
    %v594 = vmul.f32 %v592, %v481
    %s595 = scalar_lea.vmem [#allocation2], 192
    %596 = vst [vmem:[%s595] sm:$0xff] %v593
    %597 = vst [vmem:[%s595 + $0x8] sm:$0xff] %v594
    %v598 = vlaneseq
    %v599 = vshrl.u32 %v598, 7
    %v600 = vsub.s32 5, %v599
    %v601 = vrot.slane %v445, %v600
    %v602 = vmul.f32 %v601, %v480
    %v603 = vmul.f32 %v601, %v481
    %s604 = scalar_lea.vmem [#allocation2], 208
    %605 = vst [vmem:[%s604] sm:$0xff] %v602
    %606 = vst [vmem:[%s604 + $0x8] sm:$0xff] %v603
    %v607 = vlaneseq
    %v608 = vshrl.u32 %v607, 7
    %v609 = vsub.s32 6, %v608
    %v610 = vrot.slane %v445, %v609
    %v611 = vmul.f32 %v610, %v480
    %v612 = vmul.f32 %v610, %v481
    %s613 = scalar_lea.vmem [#allocation2], 224
    %614 = vst [vmem:[%s613] sm:$0xff] %v611
    %615 = vst [vmem:[%s613 + $0x8] sm:$0xff] %v612
    %v616 = vlaneseq
    %v617 = vshrl.u32 %v616, 7
    %v618 = vsub.s32 7, %v617
    %v619 = vrot.slane %v445, %v618
    %v620 = vmul.f32 %v619, %v480
    %v621 = vmul.f32 %v619, %v481
    %s622 = scalar_lea.vmem [#allocation2], 240
    %623 = vst [vmem:[%s622] sm:$0xff] %v620
    %624 = vst [vmem:[%s622 + $0x8] sm:$0xff] %v621
    %v625 = vld [vmem:[#allocation2] sm:$0xff]
    %v626 = vld [vmem:[#allocation2 + $0x8] sm:$0xff]
    %v627 = vld [vmem:[#allocation2 + $0x10] sm:$0xff]
    %v628 = vld [vmem:[#allocation2 + $0x18] sm:$0xff]
    %v629 = vld [vmem:[#allocation2 + $0x20] sm:$0xff]
    %v630 = vld [vmem:[#allocation2 + $0x28] sm:$0xff]
    %v631 = vld [vmem:[#allocation2 + $0x30] sm:$0xff]
    %v632 = vld [vmem:[#allocation2 + $0x38] sm:$0xff]
    %v633 = vld [vmem:[#allocation2 + $0x40] sm:$0xff]
    %v634 = vld [vmem:[#allocation2 + $0x48] sm:$0xff]
    %v635 = vld [vmem:[#allocation2 + $0x50] sm:$0xff]
    %v636 = vld [vmem:[#allocation2 + $0x58] sm:$0xff]
    %v637 = vld [vmem:[#allocation2 + $0x60] sm:$0xff]
    %v638 = vld [vmem:[#allocation2 + $0x68] sm:$0xff]
    %v639 = vld [vmem:[#allocation2 + $0x70] sm:$0xff]
    %v640 = vld [vmem:[#allocation2 + $0x78] sm:$0xff]
    %v641 = vld [vmem:[#allocation2 + $0x80] sm:$0xff]
    %v642 = vld [vmem:[#allocation2 + $0x88] sm:$0xff]
    %v643 = vld [vmem:[#allocation2 + $0x90] sm:$0xff]
    %v644 = vld [vmem:[#allocation2 + $0x98] sm:$0xff]
    %v645 = vld [vmem:[#allocation2 + $0xa0] sm:$0xff]
    %v646 = vld [vmem:[#allocation2 + $0xa8] sm:$0xff]
    %v647 = vld [vmem:[#allocation2 + $0xb0] sm:$0xff]
    %v648 = vld [vmem:[#allocation2 + $0xb8] sm:$0xff]
    %v649 = vld [vmem:[#allocation2 + $0xc0] sm:$0xff]
    %v650 = vld [vmem:[#allocation2 + $0xc8] sm:$0xff]
    %v651 = vld [vmem:[#allocation2 + $0xd0] sm:$0xff]
    %v652 = vld [vmem:[#allocation2 + $0xd8] sm:$0xff]
    %v653 = vld [vmem:[#allocation2 + $0xe0] sm:$0xff]
    %v654 = vld [vmem:[#allocation2 + $0xe8] sm:$0xff]
    %v655 = vld [vmem:[#allocation2 + $0xf0] sm:$0xff]
    %v656 = vld [vmem:[#allocation2 + $0xf8] sm:$0xff]
    %v657 = vmul.f32 %v625, 1.442695
    %v658 = vpow.pop %v657
    %v659 = vmul.f32 %v626, 1.442695
    %v660 = vpow.pop %v659
    %v661 = vmul.f32 %v627, 1.442695
    %v662 = vpow.pop %v661
    %v663 = vmul.f32 %v628, 1.442695
    %v664 = vpow.pop %v663
    %v665 = vmul.f32 %v629, 1.442695
    %v666 = vpow.pop %v665
    %v667 = vmul.f32 %v630, 1.442695
    %v668 = vpow.pop %v667
    %v669 = vmul.f32 %v631, 1.442695
    %v670 = vpow.pop %v669
    %v671 = vmul.f32 %v632, 1.442695
    %v672 = vpow.pop %v671
    %v673 = vmul.f32 %v633, 1.442695
    %v674 = vpow.pop %v673
    %v675 = vmul.f32 %v634, 1.442695
    %v676 = vpow.pop %v675
    %v677 = vmul.f32 %v635, 1.442695
    %v678 = vpow.pop %v677
    %v679 = vmul.f32 %v636, 1.442695
    %v680 = vpow.pop %v679
    %v681 = vmul.f32 %v637, 1.442695
    %v682 = vpow.pop %v681
    %v683 = vmul.f32 %v638, 1.442695
    %v684 = vpow.pop %v683
    %v685 = vmul.f32 %v639, 1.442695
    %v686 = vpow.pop %v685
    %v687 = vmul.f32 %v640, 1.442695
    %v688 = vpow.pop %v687
    %v689 = vmul.f32 %v641, 1.442695
    %v690 = vpow.pop %v689
    %v691 = vmul.f32 %v642, 1.442695
    %v692 = vpow.pop %v691
    %v693 = vmul.f32 %v643, 1.442695
    %v694 = vpow.pop %v693
    %v695 = vmul.f32 %v644, 1.442695
    %v696 = vpow.pop %v695
    %v697 = vmul.f32 %v645, 1.442695
    %v698 = vpow.pop %v697
    %v699 = vmul.f32 %v646, 1.442695
    %v700 = vpow.pop %v699
    %v701 = vmul.f32 %v647, 1.442695
    %v702 = vpow.pop %v701
    %v703 = vmul.f32 %v648, 1.442695
    %v704 = vpow.pop %v703
    %v705 = vmul.f32 %v649, 1.442695
    %v706 = vpow.pop %v705
    %v707 = vmul.f32 %v650, 1.442695
    %v708 = vpow.pop %v707
    %v709 = vmul.f32 %v651, 1.442695
    %v710 = vpow.pop %v709
    %v711 = vmul.f32 %v652, 1.442695
    %v712 = vpow.pop %v711
    %v713 = vmul.f32 %v653, 1.442695
    %v714 = vpow.pop %v713
    %v715 = vmul.f32 %v654, 1.442695
    %v716 = vpow.pop %v715
    %v717 = vmul.f32 %v655, 1.442695
    %v718 = vpow.pop %v717
    %v719 = vmul.f32 %v656, 1.442695
    %v720 = vpow.pop %v719
    %721 = vst [vmem:[#allocation2] sm:$0xff] %v658
    %722 = vst [vmem:[#allocation2 + $0x8] sm:$0xff] %v660
    %723 = vst [vmem:[#allocation2 + $0x10] sm:$0xff] %v662
    %724 = vst [vmem:[#allocation2 + $0x18] sm:$0xff] %v664
    %725 = vst [vmem:[#allocation2 + $0x20] sm:$0xff] %v666
    %726 = vst [vmem:[#allocation2 + $0x28] sm:$0xff] %v668
    %727 = vst [vmem:[#allocation2 + $0x30] sm:$0xff] %v670
    %728 = vst [vmem:[#allocation2 + $0x38] sm:$0xff] %v672
    %729 = vst [vmem:[#allocation2 + $0x40] sm:$0xff] %v674
    %730 = vst [vmem:[#allocation2 + $0x48] sm:$0xff] %v676
    %731 = vst [vmem:[#allocation2 + $0x50] sm:$0xff] %v678
    %732 = vst [vmem:[#allocation2 + $0x58] sm:$0xff] %v680
    %733 = vst [vmem:[#allocation2 + $0x60] sm:$0xff] %v682
    %734 = vst [vmem:[#allocation2 + $0x68] sm:$0xff] %v684
    %735 = vst [vmem:[#allocation2 + $0x70] sm:$0xff] %v686
    %736 = vst [vmem:[#allocation2 + $0x78] sm:$0xff] %v688
    %737 = vst [vmem:[#allocation2 + $0x80] sm:$0xff] %v690
    %738 = vst [vmem:[#allocation2 + $0x88] sm:$0xff] %v692
    %739 = vst [vmem:[#allocation2 + $0x90] sm:$0xff] %v694
    %740 = vst [vmem:[#allocation2 + $0x98] sm:$0xff] %v696
    %741 = vst [vmem:[#allocation2 + $0xa0] sm:$0xff] %v698
    %742 = vst [vmem:[#allocation2 + $0xa8] sm:$0xff] %v700
    %743 = vst [vmem:[#allocation2 + $0xb0] sm:$0xff] %v702
    %744 = vst [vmem:[#allocation2 + $0xb8] sm:$0xff] %v704
    %745 = vst [vmem:[#allocation2 + $0xc0] sm:$0xff] %v706
    %746 = vst [vmem:[#allocation2 + $0xc8] sm:$0xff] %v708
    %747 = vst [vmem:[#allocation2 + $0xd0] sm:$0xff] %v710
    %748 = vst [vmem:[#allocation2 + $0xd8] sm:$0xff] %v712
    %749 = vst [vmem:[#allocation2 + $0xe0] sm:$0xff] %v714
    %750 = vst [vmem:[#allocation2 + $0xe8] sm:$0xff] %v716
    %751 = vst [vmem:[#allocation2 + $0xf0] sm:$0xff] %v718
    %752 = vst [vmem:[#allocation2 + $0xf8] sm:$0xff] %v720
    %754 = vset.pattern.permute.xlu0 0
    %755 = vperm.xlu0 %754, %v462
    %v756 = vpop.permute.xlu0 %755
    %759 = vset.pattern.permute.xlu0 0
    %760 = vperm.xlu0 %759, %v463
    %v761 = vpop.permute.xlu0 %760
    %v763 = vlaneseq
    %v764 = vshrl.u32 %v763, 7
    %v765 = vsub.s32 0, %v764
    %v766 = vrot.slane %v478, %v765
    %v767 = vmul.f32 %v756, %v766
    %v768 = vmul.f32 %v761, %v766
    %v769 = vld [vmem:[#allocation2] sm:$0xff]
    %v770 = vld [vmem:[#allocation2 + $0x8] sm:$0xff]
    %v771 = vmul.f32 %v769, 0.0
    %v772 = vmul.f32 %v770, 0.0
    %v773 = vadd.f32 %v771, %v767
    %v774 = vadd.f32 %v772, %v768
    %776 = vset.pattern.permute.xlu0 0
    %777 = vperm.xlu0 %776, %v464
    %v778 = vpop.permute.xlu0 %777
    %781 = vset.pattern.permute.xlu0 0
    %782 = vperm.xlu0 %781, %v465
    %v783 = vpop.permute.xlu0 %782
    %v785 = vmul.f32 %v778, %v773
    %v786 = vmul.f32 %v783, %v774
    %v787 = vadd.f32 %v785, %v786
    %v788 = vrot.slane %v787, 4
    %v789 = vadd.f32 %v787, %v788
    %v790 = vrot.slane %v789, 2
    %v791 = vadd.f32 %v789, %v790
    %v792 = vrot.slane %v791, 1
    %v793 = vadd.f32 %v791, %v792
    %794 = vst [vmem:[#allocation3] sm:$0x1] %v793
    %795 = vset.pattern.permute.xlu0 1
    %796 = vperm.xlu0 %795, %v462
    %v797 = vpop.permute.xlu0 %796
    %799 = vset.pattern.permute.xlu0 1
    %800 = vperm.xlu0 %799, %v463
    %v801 = vpop.permute.xlu0 %800
    %v803 = vlaneseq
    %v804 = vshrl.u32 %v803, 7
    %v805 = vsub.s32 1, %v804
    %v806 = vrot.slane %v478, %v805
    %v807 = vmul.f32 %v797, %v806
    %v808 = vmul.f32 %v801, %v806
    %v809 = vld [vmem:[%s496] sm:$0xff]
    %v810 = vld [vmem:[%s496 + $0x8] sm:$0xff]
    %v811 = vmul.f32 %v809, %v773
    %v812 = vmul.f32 %v810, %v774
    %v813 = vadd.f32 %v811, %v807
    %v814 = vadd.f32 %v812, %v808
    %815 = vset.pattern.permute.xlu0 1
    %816 = vperm.xlu0 %815, %v464
    %v817 = vpop.permute.xlu0 %816
    %819 = vset.pattern.permute.xlu0 1
    %820 = vperm.xlu0 %819, %v465
    %v821 = vpop.permute.xlu0 %820
    %v823 = vmul.f32 %v817, %v813
    %v824 = vmul.f32 %v821, %v814
    %v825 = vadd.f32 %v823, %v824
    %v826 = vrot.slane %v825, 4
    %v827 = vadd.f32 %v825, %v826
    %v828 = vrot.slane %v827, 2
    %v829 = vadd.f32 %v827, %v828
    %v830 = vrot.slane %v829, 1
    %v831 = vadd.f32 %v829, %v830
    %832 = vst [vmem:[#allocation3 + $0x1] sm:$0x1] %v831
    %833 = vset.pattern.permute.xlu0 2
    %834 = vperm.xlu0 %833, %v462
    %v835 = vpop.permute.xlu0 %834
    %837 = vset.pattern.permute.xlu0 2
    %838 = vperm.xlu0 %837, %v463
    %v839 = vpop.permute.xlu0 %838
    %v841 = vlaneseq
    %v842 = vshrl.u32 %v841, 7
    %v843 = vsub.s32 2, %v842
    %v844 = vrot.slane %v478, %v843
    %v845 = vmul.f32 %v835, %v844
    %v846 = vmul.f32 %v839, %v844
    %v847 = vld [vmem:[%s505] sm:$0xff]
    %v848 = vld [vmem:[%s505 + $0x8] sm:$0xff]
    %v849 = vmul.f32 %v847, %v813
    %v850 = vmul.f32 %v848, %v814
    %v851 = vadd.f32 %v849, %v845
    %v852 = vadd.f32 %v850, %v846
    %853 = vset.pattern.permute.xlu0 2
    %854 = vperm.xlu0 %853, %v464
    %v855 = vpop.permute.xlu0 %854
    %857 = vset.pattern.permute.xlu0 2
    %858 = vperm.xlu0 %857, %v465
    %v859 = vpop.permute.xlu0 %858
    %v861 = vmul.f32 %v855, %v851
    %v862 = vmul.f32 %v859, %v852
    %v863 = vadd.f32 %v861, %v862
    %v864 = vrot.slane %v863, 4
    %v865 = vadd.f32 %v863, %v864
    %v866 = vrot.slane %v865, 2
    %v867 = vadd.f32 %v865, %v866
    %v868 = vrot.slane %v867, 1
    %v869 = vadd.f32 %v867, %v868
    %870 = vst [vmem:[#allocation3 + $0x2] sm:$0x1] %v869
    %871 = vset.pattern.permute.xlu0 3
    %872 = vperm.xlu0 %871, %v462
    %v873 = vpop.permute.xlu0 %872
    %875 = vset.pattern.permute.xlu0 3
    %876 = vperm.xlu0 %875, %v463
    %v877 = vpop.permute.xlu0 %876
    %v879 = vlaneseq
    %v880 = vshrl.u32 %v879, 7
    %v881 = vsub.s32 3, %v880
    %v882 = vrot.slane %v478, %v881
    %v883 = vmul.f32 %v873, %v882
    %v884 = vmul.f32 %v877, %v882
    %v885 = vld [vmem:[%s514] sm:$0xff]
    %v886 = vld [vmem:[%s514 + $0x8] sm:$0xff]
    %v887 = vmul.f32 %v885, %v851
    %v888 = vmul.f32 %v886, %v852
    %v889 = vadd.f32 %v887, %v883
    %v890 = vadd.f32 %v888, %v884
    %891 = vset.pattern.permute.xlu0 3
    %892 = vperm.xlu0 %891, %v464
    %v893 = vpop.permute.xlu0 %892
    %895 = vset.pattern.permute.xlu0 3
    %896 = vperm.xlu0 %895, %v465
    %v897 = vpop.permute.xlu0 %896
    %v899 = vmul.f32 %v893, %v889
    %v900 = vmul.f32 %v897, %v890
    %v901 = vadd.f32 %v899, %v900
    %v902 = vrot.slane %v901, 4
    %v903 = vadd.f32 %v901, %v902
    %v904 = vrot.slane %v903, 2
    %v905 = vadd.f32 %v903, %v904
    %v906 = vrot.slane %v905, 1
    %v907 = vadd.f32 %v905, %v906
    %908 = vst [vmem:[#allocation3 + $0x3] sm:$0x1] %v907
    %909 = vset.pattern.permute.xlu0 4
    %910 = vperm.xlu0 %909, %v462
    %v911 = vpop.permute.xlu0 %910
    %913 = vset.pattern.permute.xlu0 4
    %914 = vperm.xlu0 %913, %v463
    %v915 = vpop.permute.xlu0 %914
    %v917 = vlaneseq
    %v918 = vshrl.u32 %v917, 7
    %v919 = vsub.s32 4, %v918
    %v920 = vrot.slane %v478, %v919
    %v921 = vmul.f32 %v911, %v920
    %v922 = vmul.f32 %v915, %v920
    %v923 = vld [vmem:[%s523] sm:$0xff]
    %v924 = vld [vmem:[%s523 + $0x8] sm:$0xff]
    %v925 = vmul.f32 %v923, %v889
    %v926 = vmul.f32 %v924, %v890
    %v927 = vadd.f32 %v925, %v921
    %v928 = vadd.f32 %v926, %v922
    %929 = vset.pattern.permute.xlu0 4
    %930 = vperm.xlu0 %929, %v464
    %v931 = vpop.permute.xlu0 %930
    %933 = vset.pattern.permute.xlu0 4
    %934 = vperm.xlu0 %933, %v465
    %v935 = vpop.permute.xlu0 %934
    %v937 = vmul.f32 %v931, %v927
    %v938 = vmul.f32 %v935, %v928
    %v939 = vadd.f32 %v937, %v938
    %v940 = vrot.slane %v939, 4
    %v941 = vadd.f32 %v939, %v940
    %v942 = vrot.slane %v941, 2
    %v943 = vadd.f32 %v941, %v942
    %v944 = vrot.slane %v943, 1
    %v945 = vadd.f32 %v943, %v944
    %946 = vst [vmem:[#allocation3 + $0x4] sm:$0x1] %v945
    %947 = vset.pattern.permute.xlu0 5
    %948 = vperm.xlu0 %947, %v462
    %v949 = vpop.permute.xlu0 %948
    %951 = vset.pattern.permute.xlu0 5
    %952 = vperm.xlu0 %951, %v463
    %v953 = vpop.permute.xlu0 %952
    %v955 = vlaneseq
    %v956 = vshrl.u32 %v955, 7
    %v957 = vsub.s32 5, %v956
    %v958 = vrot.slane %v478, %v957
    %v959 = vmul.f32 %v949, %v958
    %v960 = vmul.f32 %v953, %v958
    %v961 = vld [vmem:[%s532] sm:$0xff]
    %v962 = vld [vmem:[%s532 + $0x8] sm:$0xff]
    %v963 = vmul.f32 %v961, %v927
    %v964 = vmul.f32 %v962, %v928
    %v965 = vadd.f32 %v963, %v959
    %v966 = vadd.f32 %v964, %v960
    %967 = vset.pattern.permute.xlu0 5
    %968 = vperm.xlu0 %967, %v464
    %v969 = vpop.permute.xlu0 %968
    %971 = vset.pattern.permute.xlu0 5
    %972 = vperm.xlu0 %971, %v465
    %v973 = vpop.permute.xlu0 %972
    %v975 = vmul.f32 %v969, %v965
    %v976 = vmul.f32 %v973, %v966
    %v977 = vadd.f32 %v975, %v976
    %v978 = vrot.slane %v977, 4
    %v979 = vadd.f32 %v977, %v978
    %v980 = vrot.slane %v979, 2
    %v981 = vadd.f32 %v979, %v980
    %v982 = vrot.slane %v981, 1
    %v983 = vadd.f32 %v981, %v982
    %984 = vst [vmem:[#allocation3 + $0x5] sm:$0x1] %v983
    %985 = vset.pattern.permute.xlu0 6
    %986 = vperm.xlu0 %985, %v462
    %v987 = vpop.permute.xlu0 %986
    %989 = vset.pattern.permute.xlu0 6
    %990 = vperm.xlu0 %989, %v463
    %v991 = vpop.permute.xlu0 %990
    %v993 = vlaneseq
    %v994 = vshrl.u32 %v993, 7
    %v995 = vsub.s32 6, %v994
    %v996 = vrot.slane %v478, %v995
    %v997 = vmul.f32 %v987, %v996
    %v998 = vmul.f32 %v991, %v996
    %v999 = vld [vmem:[%s541] sm:$0xff]
    %v1000 = vld [vmem:[%s541 + $0x8] sm:$0xff]
    %v1001 = vmul.f32 %v999, %v965
    %v1002 = vmul.f32 %v1000, %v966
    %v1003 = vadd.f32 %v1001, %v997
    %v1004 = vadd.f32 %v1002, %v998
    %1005 = vset.pattern.permute.xlu0 6
    %1006 = vperm.xlu0 %1005, %v464
    %v1007 = vpop.permute.xlu0 %1006
    %1009 = vset.pattern.permute.xlu0 6
    %1010 = vperm.xlu0 %1009, %v465
    %v1011 = vpop.permute.xlu0 %1010
    %v1013 = vmul.f32 %v1007, %v1003
    %v1014 = vmul.f32 %v1011, %v1004
    %v1015 = vadd.f32 %v1013, %v1014
    %v1016 = vrot.slane %v1015, 4
    %v1017 = vadd.f32 %v1015, %v1016
    %v1018 = vrot.slane %v1017, 2
    %v1019 = vadd.f32 %v1017, %v1018
    %v1020 = vrot.slane %v1019, 1
    %v1021 = vadd.f32 %v1019, %v1020
    %1022 = vst [vmem:[#allocation3 + $0x6] sm:$0x1] %v1021
    %1023 = vset.pattern.permute.xlu0 7
    %1024 = vperm.xlu0 %1023, %v462
    %v1025 = vpop.permute.xlu0 %1024
    %1027 = vset.pattern.permute.xlu0 7
    %1028 = vperm.xlu0 %1027, %v463
    %v1029 = vpop.permute.xlu0 %1028
    %v1031 = vlaneseq
    %v1032 = vshrl.u32 %v1031, 7
    %v1033 = vsub.s32 7, %v1032
    %v1034 = vrot.slane %v478, %v1033
    %v1035 = vmul.f32 %v1025, %v1034
    %v1036 = vmul.f32 %v1029, %v1034
    %v1037 = vld [vmem:[%s550] sm:$0xff]
    %v1038 = vld [vmem:[%s550 + $0x8] sm:$0xff]
    %v1039 = vmul.f32 %v1037, %v1003
    %v1040 = vmul.f32 %v1038, %v1004
    %v1041 = vadd.f32 %v1039, %v1035
    %v1042 = vadd.f32 %v1040, %v1036
    %1043 = vset.pattern.permute.xlu0 7
    %1044 = vperm.xlu0 %1043, %v464
    %v1045 = vpop.permute.xlu0 %1044
    %1047 = vset.pattern.permute.xlu0 7
    %1048 = vperm.xlu0 %1047, %v465
    %v1049 = vpop.permute.xlu0 %1048
    %v1051 = vmul.f32 %v1045, %v1041
    %v1052 = vmul.f32 %v1049, %v1042
    %v1053 = vadd.f32 %v1051, %v1052
    %v1054 = vrot.slane %v1053, 4
    %v1055 = vadd.f32 %v1053, %v1054
    %v1056 = vrot.slane %v1055, 2
    %v1057 = vadd.f32 %v1055, %v1056
    %v1058 = vrot.slane %v1057, 1
    %v1059 = vadd.f32 %v1057, %v1058
    %1060 = vst [vmem:[#allocation3 + $0x7] sm:$0x1] %v1059
    %1061 = vset.pattern.permute.xlu0 8
    %1062 = vperm.xlu0 %1061, %v462
    %v1063 = vpop.permute.xlu0 %1062
    %1065 = vset.pattern.permute.xlu0 8
    %1066 = vperm.xlu0 %1065, %v463
    %v1067 = vpop.permute.xlu0 %1066
    %v1069 = vlaneseq
    %v1070 = vshrl.u32 %v1069, 7
    %v1071 = vsub.s32 0, %v1070
    %v1072 = vrot.slane %v479, %v1071
    %v1073 = vmul.f32 %v1063, %v1072
    %v1074 = vmul.f32 %v1067, %v1072
    %v1075 = vld [vmem:[%s559] sm:$0xff]
    %v1076 = vld [vmem:[%s559 + $0x8] sm:$0xff]
    %v1077 = vmul.f32 %v1075, 0.0
    %v1078 = vmul.f32 %v1076, 0.0
    %v1079 = vadd.f32 %v1077, %v1073
    %v1080 = vadd.f32 %v1078, %v1074
    %1081 = vset.pattern.permute.xlu0 8
    %1082 = vperm.xlu0 %1081, %v464
    %v1083 = vpop.permute.xlu0 %1082
    %1085 = vset.pattern.permute.xlu0 8
    %1086 = vperm.xlu0 %1085, %v465
    %v1087 = vpop.permute.xlu0 %1086
    %v1089 = vmul.f32 %v1083, %v1079
    %v1090 = vmul.f32 %v1087, %v1080
    %v1091 = vadd.f32 %v1089, %v1090
    %v1092 = vrot.slane %v1091, 4
    %v1093 = vadd.f32 %v1091, %v1092
    %v1094 = vrot.slane %v1093, 2
    %v1095 = vadd.f32 %v1093, %v1094
    %v1096 = vrot.slane %v1095, 1
    %v1097 = vadd.f32 %v1095, %v1096
    %1098 = vst [vmem:[#allocation3 + $0x8] sm:$0x1] %v1097
    %1099 = vset.pattern.permute.xlu0 9
    %1100 = vperm.xlu0 %1099, %v462
    %v1101 = vpop.permute.xlu0 %1100
    %1103 = vset.pattern.permute.xlu0 9
    %1104 = vperm.xlu0 %1103, %v463
    %v1105 = vpop.permute.xlu0 %1104
    %v1107 = vlaneseq
    %v1108 = vshrl.u32 %v1107, 7
    %v1109 = vsub.s32 1, %v1108
    %v1110 = vrot.slane %v479, %v1109
    %v1111 = vmul.f32 %v1101, %v1110
    %v1112 = vmul.f32 %v1105, %v1110
    %v1113 = vld [vmem:[%s568] sm:$0xff]
    %v1114 = vld [vmem:[%s568 + $0x8] sm:$0xff]
    %v1115 = vmul.f32 %v1113, %v1079
    %v1116 = vmul.f32 %v1114, %v1080
    %v1117 = vadd.f32 %v1115, %v1111
    %v1118 = vadd.f32 %v1116, %v1112
    %1119 = vset.pattern.permute.xlu0 9
    %1120 = vperm.xlu0 %1119, %v464
    %v1121 = vpop.permute.xlu0 %1120
    %1123 = vset.pattern.permute.xlu0 9
    %1124 = vperm.xlu0 %1123, %v465
    %v1125 = vpop.permute.xlu0 %1124
    %v1127 = vmul.f32 %v1121, %v1117
    %v1128 = vmul.f32 %v1125, %v1118
    %v1129 = vadd.f32 %v1127, %v1128
    %v1130 = vrot.slane %v1129, 4
    %v1131 = vadd.f32 %v1129, %v1130
    %v1132 = vrot.slane %v1131, 2
    %v1133 = vadd.f32 %v1131, %v1132
    %v1134 = vrot.slane %v1133, 1
    %v1135 = vadd.f32 %v1133, %v1134
    %1136 = vst [vmem:[#allocation3 + $0x9] sm:$0x1] %v1135
    %1137 = vset.pattern.permute.xlu0 10
    %1138 = vperm.xlu0 %1137, %v462
    %v1139 = vpop.permute.xlu0 %1138
    %1141 = vset.pattern.permute.xlu0 10
    %1142 = vperm.xlu0 %1141, %v463
    %v1143 = vpop.permute.xlu0 %1142
    %v1145 = vlaneseq
    %v1146 = vshrl.u32 %v1145, 7
    %v1147 = vsub.s32 2, %v1146
    %v1148 = vrot.slane %v479, %v1147
    %v1149 = vmul.f32 %v1139, %v1148
    %v1150 = vmul.f32 %v1143, %v1148
    %v1151 = vld [vmem:[%s577] sm:$0xff]
    %v1152 = vld [vmem:[%s577 + $0x8] sm:$0xff]
    %v1153 = vmul.f32 %v1151, %v1117
    %v1154 = vmul.f32 %v1152, %v1118
    %v1155 = vadd.f32 %v1153, %v1149
    %v1156 = vadd.f32 %v1154, %v1150
    %1157 = vset.pattern.permute.xlu0 10
    %1158 = vperm.xlu0 %1157, %v464
    %v1159 = vpop.permute.xlu0 %1158
    %1161 = vset.pattern.permute.xlu0 10
    %1162 = vperm.xlu0 %1161, %v465
    %v1163 = vpop.permute.xlu0 %1162
    %v1165 = vmul.f32 %v1159, %v1155
    %v1166 = vmul.f32 %v1163, %v1156
    %v1167 = vadd.f32 %v1165, %v1166
    %v1168 = vrot.slane %v1167, 4
    %v1169 = vadd.f32 %v1167, %v1168
    %v1170 = vrot.slane %v1169, 2
    %v1171 = vadd.f32 %v1169, %v1170
    %v1172 = vrot.slane %v1171, 1
    %v1173 = vadd.f32 %v1171, %v1172
    %1174 = vst [vmem:[#allocation3 + $0xa] sm:$0x1] %v1173
    %1175 = vset.pattern.permute.xlu0 11
    %1176 = vperm.xlu0 %1175, %v462
    %v1177 = vpop.permute.xlu0 %1176
    %1179 = vset.pattern.permute.xlu0 11
    %1180 = vperm.xlu0 %1179, %v463
    %v1181 = vpop.permute.xlu0 %1180
    %v1183 = vlaneseq
    %v1184 = vshrl.u32 %v1183, 7
    %v1185 = vsub.s32 3, %v1184
    %v1186 = vrot.slane %v479, %v1185
    %v1187 = vmul.f32 %v1177, %v1186
    %v1188 = vmul.f32 %v1181, %v1186
    %v1189 = vld [vmem:[%s586] sm:$0xff]
    %v1190 = vld [vmem:[%s586 + $0x8] sm:$0xff]
    %v1191 = vmul.f32 %v1189, %v1155
    %v1192 = vmul.f32 %v1190, %v1156
    %v1193 = vadd.f32 %v1191, %v1187
    %v1194 = vadd.f32 %v1192, %v1188
    %1195 = vset.pattern.permute.xlu0 11
    %1196 = vperm.xlu0 %1195, %v464
    %v1197 = vpop.permute.xlu0 %1196
    %1199 = vset.pattern.permute.xlu0 11
    %1200 = vperm.xlu0 %1199, %v465
    %v1201 = vpop.permute.xlu0 %1200
    %v1203 = vmul.f32 %v1197, %v1193
    %v1204 = vmul.f32 %v1201, %v1194
    %v1205 = vadd.f32 %v1203, %v1204
    %v1206 = vrot.slane %v1205, 4
    %v1207 = vadd.f32 %v1205, %v1206
    %v1208 = vrot.slane %v1207, 2
    %v1209 = vadd.f32 %v1207, %v1208
    %v1210 = vrot.slane %v1209, 1
    %v1211 = vadd.f32 %v1209, %v1210
    %1212 = vst [vmem:[#allocation3 + $0xb] sm:$0x1] %v1211
    %1213 = vset.pattern.permute.xlu0 12
    %1214 = vperm.xlu0 %1213, %v462
    %v1215 = vpop.permute.xlu0 %1214
    %1217 = vset.pattern.permute.xlu0 12
    %1218 = vperm.xlu0 %1217, %v463
    %v1219 = vpop.permute.xlu0 %1218
    %v1221 = vlaneseq
    %v1222 = vshrl.u32 %v1221, 7
    %v1223 = vsub.s32 4, %v1222
    %v1224 = vrot.slane %v479, %v1223
    %v1225 = vmul.f32 %v1215, %v1224
    %v1226 = vmul.f32 %v1219, %v1224
    %v1227 = vld [vmem:[%s595] sm:$0xff]
    %v1228 = vld [vmem:[%s595 + $0x8] sm:$0xff]
    %v1229 = vmul.f32 %v1227, %v1193
    %v1230 = vmul.f32 %v1228, %v1194
    %v1231 = vadd.f32 %v1229, %v1225
    %v1232 = vadd.f32 %v1230, %v1226
    %1233 = vset.pattern.permute.xlu0 12
    %1234 = vperm.xlu0 %1233, %v464
    %v1235 = vpop.permute.xlu0 %1234
    %1237 = vset.pattern.permute.xlu0 12
    %1238 = vperm.xlu0 %1237, %v465
    %v1239 = vpop.permute.xlu0 %1238
    %v1241 = vmul.f32 %v1235, %v1231
    %v1242 = vmul.f32 %v1239, %v1232
    %v1243 = vadd.f32 %v1241, %v1242
    %v1244 = vrot.slane %v1243, 4
    %v1245 = vadd.f32 %v1243, %v1244
    %v1246 = vrot.slane %v1245, 2
    %v1247 = vadd.f32 %v1245, %v1246
    %v1248 = vrot.slane %v1247, 1
    %v1249 = vadd.f32 %v1247, %v1248
    %1250 = vst [vmem:[#allocation3 + $0xc] sm:$0x1] %v1249
    %1251 = vset.pattern.permute.xlu0 13
    %1252 = vperm.xlu0 %1251, %v462
    %v1253 = vpop.permute.xlu0 %1252
    %1255 = vset.pattern.permute.xlu0 13
    %1256 = vperm.xlu0 %1255, %v463
    %v1257 = vpop.permute.xlu0 %1256
    %v1259 = vlaneseq
    %v1260 = vshrl.u32 %v1259, 7
    %v1261 = vsub.s32 5, %v1260
    %v1262 = vrot.slane %v479, %v1261
    %v1263 = vmul.f32 %v1253, %v1262
    %v1264 = vmul.f32 %v1257, %v1262
    %v1265 = vld [vmem:[%s604] sm:$0xff]
    %v1266 = vld [vmem:[%s604 + $0x8] sm:$0xff]
    %v1267 = vmul.f32 %v1265, %v1231
    %v1268 = vmul.f32 %v1266, %v1232
    %v1269 = vadd.f32 %v1267, %v1263
    %v1270 = vadd.f32 %v1268, %v1264
    %1271 = vset.pattern.permute.xlu0 13
    %1272 = vperm.xlu0 %1271, %v464
    %v1273 = vpop.permute.xlu0 %1272
    %1275 = vset.pattern.permute.xlu0 13
    %1276 = vperm.xlu0 %1275, %v465
    %v1277 = vpop.permute.xlu0 %1276
    %v1279 = vmul.f32 %v1273, %v1269
    %v1280 = vmul.f32 %v1277, %v1270
    %v1281 = vadd.f32 %v1279, %v1280
    %v1282 = vrot.slane %v1281, 4
    %v1283 = vadd.f32 %v1281, %v1282
    %v1284 = vrot.slane %v1283, 2
    %v1285 = vadd.f32 %v1283, %v1284
    %v1286 = vrot.slane %v1285, 1
    %v1287 = vadd.f32 %v1285, %v1286
    %1288 = vst [vmem:[#allocation3 + $0xd] sm:$0x1] %v1287
    %1289 = vset.pattern.permute.xlu0 14
    %1290 = vperm.xlu0 %1289, %v462
    %v1291 = vpop.permute.xlu0 %1290
    %1293 = vset.pattern.permute.xlu0 14
    %1294 = vperm.xlu0 %1293, %v463
    %v1295 = vpop.permute.xlu0 %1294
    %v1297 = vlaneseq
    %v1298 = vshrl.u32 %v1297, 7
    %v1299 = vsub.s32 6, %v1298
    %v1300 = vrot.slane %v479, %v1299
    %v1301 = vmul.f32 %v1291, %v1300
    %v1302 = vmul.f32 %v1295, %v1300
    %v1303 = vld [vmem:[%s613] sm:$0xff]
    %v1304 = vld [vmem:[%s613 + $0x8] sm:$0xff]
    %v1305 = vmul.f32 %v1303, %v1269
    %v1306 = vmul.f32 %v1304, %v1270
    %v1307 = vadd.f32 %v1305, %v1301
    %v1308 = vadd.f32 %v1306, %v1302
    %1309 = vset.pattern.permute.xlu0 14
    %1310 = vperm.xlu0 %1309, %v464
    %v1311 = vpop.permute.xlu0 %1310
    %1313 = vset.pattern.permute.xlu0 14
    %1314 = vperm.xlu0 %1313, %v465
    %v1315 = vpop.permute.xlu0 %1314
    %v1317 = vmul.f32 %v1311, %v1307
    %v1318 = vmul.f32 %v1315, %v1308
    %v1319 = vadd.f32 %v1317, %v1318
    %v1320 = vrot.slane %v1319, 4
    %v1321 = vadd.f32 %v1319, %v1320
    %v1322 = vrot.slane %v1321, 2
    %v1323 = vadd.f32 %v1321, %v1322
    %v1324 = vrot.slane %v1323, 1
    %v1325 = vadd.f32 %v1323, %v1324
    %1326 = vst [vmem:[#allocation3 + $0xe] sm:$0x1] %v1325
    %1327 = vset.pattern.permute.xlu0 15
    %1328 = vperm.xlu0 %1327, %v462
    %v1329 = vpop.permute.xlu0 %1328
    %1331 = vset.pattern.permute.xlu0 15
    %1332 = vperm.xlu0 %1331, %v463
    %v1333 = vpop.permute.xlu0 %1332
    %v1335 = vlaneseq
    %v1336 = vshrl.u32 %v1335, 7
    %v1337 = vsub.s32 7, %v1336
    %v1338 = vrot.slane %v479, %v1337
    %v1339 = vmul.f32 %v1329, %v1338
    %v1340 = vmul.f32 %v1333, %v1338
    %v1341 = vld [vmem:[%s622] sm:$0xff]
    %v1342 = vld [vmem:[%s622 + $0x8] sm:$0xff]
    %v1343 = vmul.f32 %v1341, %v1307
    %v1344 = vmul.f32 %v1342, %v1308
    %v1345 = vadd.f32 %v1343, %v1339
    %v1346 = vadd.f32 %v1344, %v1340
    %1347 = vset.pattern.permute.xlu0 15
    %1348 = vperm.xlu0 %1347, %v464
    %v1349 = vpop.permute.xlu0 %1348
    %1351 = vset.pattern.permute.xlu0 15
    %1352 = vperm.xlu0 %1351, %v465
    %v1353 = vpop.permute.xlu0 %1352
    %v1355 = vmul.f32 %v1349, %v1345
    %v1356 = vmul.f32 %v1353, %v1346
    %v1357 = vadd.f32 %v1355, %v1356
    %v1358 = vrot.slane %v1357, 4
    %v1359 = vadd.f32 %v1357, %v1358
    %v1360 = vrot.slane %v1359, 2
    %v1361 = vadd.f32 %v1359, %v1360
    %v1362 = vrot.slane %v1361, 1
    %v1363 = vadd.f32 %v1361, %v1362
    %1364 = vst [vmem:[#allocation3 + $0xf] sm:$0x1] %v1363
    %v1365 = vld [vmem:[#allocation3] sm:$0xff]
    %v1366 = vld [vmem:[#allocation3 + $0x8] sm:$0xff]
    %v1367 = vld [vmem:[%s8] sm:$0x1]
    %v1369 = vlaneseq
    %v1370 = vshrl.u32 %v1369, 7
    %v1371 = vsub.s32 0, %v1370
    %v1372 = vrot.slane %v1367, %v1371
    %v1374 = vmul.f32 %v281, %v1372
    %v1375 = vmul.f32 %v282, %v1372
    %v1376 = vadd.f32 %v1365, %v1374
    %v1377 = vadd.f32 %v1366, %v1375
    %v1378 = vsub.f32 0.0, %v169
    %v1379 = vsub.f32 0.0, %v173
    %v1380 = vmul.f32 %v1378, 1.442695
    %v1381 = vpow.pop %v1380
    %v1382 = vmul.f32 %v1379, 1.442695
    %v1383 = vpow.pop %v1382
    %v1384 = vadd.f32 %v1381, 1.0
    %v1385 = vadd.f32 %v1383, 1.0
    %v1386 = vrcp.pop %v1384
    %v1387 = vmul.f32 1.0, %v1386
    %v1388 = vrcp.pop %v1385
    %v1389 = vmul.f32 1.0, %v1388
    %v1390 = vmul.f32 %v169, %v1387
    %v1391 = vmul.f32 %v173, %v1389
    %v1392 = vmul.f32 %v1376, %v1390
    %v1393 = vmul.f32 %v1377, %v1391
    %v1394 = vpack.c.bf16 %v1393, %v1392
    %v1395 = vld [vmem:[%s9] sm:$0xf]
    %v1396 = vld [vmem:[%s9 + $0x4] sm:$0xf]
    %v1397 = vld [vmem:[%s9 + $0x8] sm:$0xf]
    %v1398 = vld [vmem:[%s9 + $0xc] sm:$0xf]
    %v1399 = vld [vmem:[%s9 + $0x10] sm:$0xf]
    %v1400 = vld [vmem:[%s9 + $0x14] sm:$0xf]
    %v1401 = vld [vmem:[%s9 + $0x18] sm:$0xf]
    %v1402 = vld [vmem:[%s9 + $0x1c] sm:$0xf]
    %v1403 = vld [vmem:[%s9 + $0x20] sm:$0xf]
    %v1404 = vld [vmem:[%s9 + $0x24] sm:$0xf]
    %v1405 = vld [vmem:[%s9 + $0x28] sm:$0xf]
    %v1406 = vld [vmem:[%s9 + $0x2c] sm:$0xf]
    %v1407 = vld [vmem:[%s9 + $0x30] sm:$0xf]
    %v1408 = vld [vmem:[%s9 + $0x34] sm:$0xf]
    %v1409 = vld [vmem:[%s9 + $0x38] sm:$0xf]
    %v1410 = vld [vmem:[%s9 + $0x3c] sm:$0xf]
    %v1427 = vunpack.c.l.b16 %v1395
    %v1428 = vunpack.c.l.b16 %v1396
    %v1429 = vunpack.c.l.b16 %v1397
    %v1430 = vunpack.c.l.b16 %v1398
    %v1431 = vunpack.c.l.b16 %v1399
    %v1432 = vunpack.c.l.b16 %v1400
    %v1433 = vunpack.c.l.b16 %v1401
    %v1434 = vunpack.c.l.b16 %v1402
    %v1435 = vunpack.c.l.b16 %v1403
    %v1436 = vunpack.c.l.b16 %v1404
    %v1437 = vunpack.c.l.b16 %v1405
    %v1438 = vunpack.c.l.b16 %v1406
    %v1439 = vunpack.c.l.b16 %v1407
    %v1440 = vunpack.c.l.b16 %v1408
    %v1441 = vunpack.c.l.b16 %v1409
    %v1442 = vunpack.c.l.b16 %v1410
    %v1443 = vpack.c.b16 %v1428, %v1427
    %v1444 = vpack.c.b16 %v1430, %v1429
    %v1445 = vpack.c.b16 %v1432, %v1431
    %v1446 = vpack.c.b16 %v1434, %v1433
    %v1447 = vpack.c.b16 %v1436, %v1435
    %v1448 = vpack.c.b16 %v1438, %v1437
    %v1449 = vpack.c.b16 %v1440, %v1439
    %v1450 = vpack.c.b16 %v1442, %v1441
    %1459 = vmatprep.subr.bf16.mxu0 0
    %1460 = vmatpush1.bf16.msra.mxu0 %v1450
    %1461 = vmatprep.subr.bf16.mxu0 0
    %1462 = vmatpush1.bf16.msra.mxu0 %v1449
    %1463 = vmatprep.subr.bf16.mxu0 0
    %1464 = vmatpush1.bf16.msra.mxu0 %v1448
    %1465 = vmatprep.subr.bf16.mxu0 0
    %1466 = vmatpush1.bf16.msra.mxu0 %v1447
    %1467 = vmatprep.subr.bf16.mxu0 0
    %1468 = vmatpush1.bf16.msra.mxu0 %v1446
    %1469 = vmatprep.subr.bf16.mxu0 0
    %1470 = vmatpush1.bf16.msra.mxu0 %v1445
    %1471 = vmatprep.subr.bf16.mxu0 0
    %1472 = vmatpush1.bf16.msra.mxu0 %v1444
    %1473 = vmatprep.subr.bf16.mxu0 0
    %1474 = vmatpush1.bf16.msra.mxu0 %v1443
    %1475 = vmatprep.subr.bf16.mxu0 0
    %1476 = vmatpush2.bf16.msra.mxu0 0
    %1477 = vmatprep.subr.bf16.mxu0 0
    %1478 = vmatpush2.bf16.msra.mxu0 0
    %1479 = vmatprep.subr.bf16.mxu0 0
    %1480 = vmatpush2.bf16.msra.mxu0 0
    %1481 = vmatprep.subr.bf16.mxu0 0
    %1482 = vmatpush2.bf16.msra.mxu0 0
    %1483 = vmatprep.subr.bf16.mxu0 0
    %1484 = vmatpush2.bf16.msra.mxu0 0
    %1485 = vmatprep.subr.bf16.mxu0 0
    %1486 = vmatpush2.bf16.msra.mxu0 0
    %1487 = vmatprep.subr.bf16.mxu0 0
    %1488 = vmatpush2.bf16.msra.mxu0 0
    %1489 = vmatprep.subr.bf16.mxu0 0
    %1490 = vmatpush2.bf16.msra.mxu0 0
    %1491 = vmatprep.mubr.bf16.mxu0 0
    %1492 = vmatmul.mubr.bf16.gmra.mxu0 %v1394
    %v1493 = vpop.f32.mrf.mxu0
    %v1494 = vadd.f32 0.0, %v1493
    %v1495 = vpop.f32.mrf.mxu0
    %v1496 = vpop.f32.mrf.mxu0
    %v1497 = vadd.f32 0.0, %v1496
    %v1498 = vpop.f32.mrf.mxu0
    %1499 = vdwg.mxu0
    %v1500 = vadd.f32 %v51, %v1494
    %v1501 = vadd.f32 %v52, %v1497
    %1502 = vst.msk [vmem:[#allocation7] sm:$0xff] %vm55, %v1500
    %1503 = vst.msk [vmem:[#allocation7 + $0x8] sm:$0xff] %vm55, %v1501
    // Predicated region
    $region46: #{tpu_custom_call.1} parent=1 // pred_check
      _
    $region47: #{tpu_custom_call.1} parent=1 // pred_check_branch
      %1505 = sbr.rel (0) target = $region49
    $region48: #{tpu_custom_call.1} parent=1 // pred_region
      %s1507 = ssub.s32 256, 256
      %1508 = vsyncadd [#allocation6], %s1507
      %s1509 = sshll.u32 [#allocation7], 4
      %s1510 = int_to_ptr.vmem [resolvable:$true] %s1509
      %1515 = dma.vmem_to_hbm [thread:$0]  %s1510, 256, %s10, [#allocation6], 128, 128, 8
    $region49: #{tpu_custom_call.1} parent=1 // pred_fallthru
      _
    // Predicated region
    $region50: #{tpu_custom_call.1} parent=1 // pred_check
      _
    $region51: #{tpu_custom_call.1} parent=1 // pred_check_branch
      %1517 = sbr.rel (0) target = $region53
    $region52: #{tpu_custom_call.1} parent=1 // pred_region
      %1518 = dma.done [#allocation6], 256
    $region53: #{tpu_custom_call.1} parent=1 // pred_fallthru
      _
    %1519 = vsyncpa [#allocation5], 1
    %1520 = vsyncpa [#allocation6], 1

</llo_original>
